<compile_context>
chip_gen: v7x
topology: tpu7x:2x2x1
jax: 0.10.0
libtpu: 0.0.40
codegen_flags: <defaults>
</compile_context>

<pallas_src>
import jax
import jax.numpy as jnp
from jax import lax
from jax.experimental import pallas as pl
from jax.experimental.pallas import tpu as pltpu


# ---------------------------------------------------------------------------
# Pass A: per-vocab-tile local softmax statistics (weight-stationary grid)
# ---------------------------------------------------------------------------
def local_softmax_stats_kernel(seq_ref, wlm_ref, m_ref, z_ref):
    # Block shapes:
    #   seq_ref : (1, TT, D)     decoder sequence_output tile (bf16, pre-scaled)
    #   wlm_ref : (D, TV)        lm_head weight tile (bf16, transposed)
    #   m_ref   : (1, 1, TT, 1)  local row max for this vocab tile
    #   z_ref   : (1, 1, TT, 1)  local sum(exp(logits - m_loc))
    logits = jnp.dot(seq_ref[0], wlm_ref[...],
                     preferred_element_type=jnp.float32)            # [TT, TV] f32
    m_loc = jnp.max(logits, axis=-1, keepdims=True)                 # [TT, 1]
    z_loc = jnp.sum(jnp.exp(logits - m_loc), axis=-1, keepdims=True)
    m_ref[0, 0] = m_loc
    z_ref[0, 0] = z_loc


# ---------------------------------------------------------------------------
# Pass B: mixture log-probs per vocab tile (weight-stationary grid)
# ---------------------------------------------------------------------------
def mixture_logp_kernel(seq_ref, wlm_ref, xattn_ref, ids_ref,
                        m_ref, z_ref, pcopy_ref, logp_ref):
    # Block shapes:
    #   seq_ref   : (1, TT, D)   bf16, pre-scaled
    #   wlm_ref   : (D, TV)      bf16
    #   xattn_ref : (1, TT, S)   head-mean of last-layer cross attentions (f32)
    #   ids_ref   : (1, S, 1)    encoder input_ids (int32)
    #   m/z/pcopy : (1, TT, 1)   global softmax stats + copy gate (f32)
    #   logp_ref  : (1, TT, TV)  lane-dense output tile
    S = ids_ref.shape[1]
    TV = logp_ref.shape[2]
    v0 = pl.program_id(0) * TV                                      # vocab offset

    logits = jnp.dot(seq_ref[0], wlm_ref[...],
                     preferred_element_type=jnp.float32)            # [TT, TV]

    p = pcopy_ref[0]                                                # [TT, 1]
    inv_z = pl.reciprocal(z_ref[0], approx=True)                    # EUP, [TT, 1]
    gen = jnp.exp(logits - m_ref[0]) * ((1.0 - p) * inv_z)          # [TT, TV]

    # torch.scatter_add of (cross_attn * p_copy) into this vocab tile:
    # (xattn * p_copy) @ one_hot(input_ids - v0, TV); duplicates sum on MXU.
    ids = ids_ref[0]                                                # [S, 1] int32
    vocab_iota = lax.broadcasted_iota(jnp.int32, (S, TV), 1) + v0
    onehot = (ids == vocab_iota).astype(jnp.bfloat16)               # exact 0/1
    w16 = (xattn_ref[0] * p).astype(jnp.bfloat16)                   # [TT, S]
    copy_tile = jnp.dot(w16, onehot,
                        preferred_element_type=jnp.float32)         # [TT, TV]

    logp_ref[0] = jnp.log(gen + copy_tile + 1e-07)


# ---------------------------------------------------------------------------
# Wrapper: MT5Copy head + NLLLoss(ignore_index=-100)
# ---------------------------------------------------------------------------
def mt5copy_head_loss(seq_out, w_lm_t, w_copy, b_copy, cross_attn,
                      input_ids, labels, *, tv=None, tt=None):
    """Returns (loss, log_probs[B,T,V]).

    seq_out    : [B, T, D] decoder sequence_output
    w_lm_t     : [D, V]    lm_head weight, transposed (no bias in T5)
    w_copy     : [1, D]    linear_copy weight
    b_copy     : [1]       linear_copy bias
    cross_attn : [B, H, T, S] last-layer cross attentions
    input_ids  : [B, S] int, labels : [B, T] int (-100 = ignore)
    """
    B, T, D = seq_out.shape
    V = w_lm_t.shape[1]
    S = cross_attn.shape[3]

    # Tile sizes.  For real MT5 (V ~ 32k-250k) keep the working set modest
    # for v7x (64 MiB physical VMEM); raise vmem_limit_bytes / tv on v5e/v6e.
    if tv is None:
        tv = V if V <= 2048 else 2048
    if tt is None:
        tt = T if T <= 256 else 256
    assert V % tv == 0, "vocab size must be divisible by the V tile"
    assert T % tt == 0, "decoder length must be divisible by the T tile"
    n_vt = V // tv
    n_tt = T // tt

    # XLA glue (tiny / mem-bound): tie-embedding rescale + bf16 cast (done
    # once, halves repeated seq DMA), head-mean, p_copy matvec, id reshape.
    scale = float(D) ** -0.5
    seq_scaled = seq_out.astype(jnp.float32) * scale                 # [B, T, D]
    seq_bf16 = seq_scaled.astype(jnp.bfloat16)
    w_lm_bf16 = w_lm_t.astype(jnp.bfloat16)                          # [D, V]

    copy_logit = (jnp.einsum('btd,d->bt', seq_scaled,
                             w_copy.reshape(D).astype(jnp.float32))
                  + b_copy.astype(jnp.float32)[0])                   # [B, T]
    p_copy = jax.nn.sigmoid(copy_logit)[..., None]                   # [B, T, 1]

    xattn_mean = jnp.mean(cross_attn.astype(jnp.float32), axis=1)    # [B, T, S]
    ids3 = input_ids.reshape(B, S, 1).astype(jnp.int32)

    # ---- Pass A: per-tile local softmax stats (weight-stationary) ----------
    stats_grid = pltpu.PrefetchScalarGridSpec(
        num_scalar_prefetch=0,
        grid=(n_vt, B, n_tt),
        in_specs=[
            pl.BlockSpec((1, tt, D), lambda v, b, t: (b, t, 0)),     # seq (bf16)
            pl.BlockSpec((D, tv), lambda v, b, t: (0, v)),           # lm_head W^T
        ],
        out_specs=[
            pl.BlockSpec((1, 1, tt, 1), lambda v, b, t: (b, v, t, 0)),  # m_loc
            pl.BlockSpec((1, 1, tt, 1), lambda v, b, t: (b, v, t, 0)),  # z_loc
        ],
    )
    m_loc, z_loc = pl.pallas_call(
        local_softmax_stats_kernel,
        out_shape=(
            jax.ShapeDtypeStruct((B, n_vt, T, 1), jnp.float32),
            jax.ShapeDtypeStruct((B, n_vt, T, 1), jnp.float32),
        ),
        grid_spec=stats_grid,
        compiler_params=pltpu.CompilerParams(
            dimension_semantics=("parallel", "parallel", "parallel")),
    )(seq_bf16, w_lm_bf16)

    # Combine local stats into global (m, Z) — tiny [B, n_vt, T, 1] tensors.
    m = jnp.max(m_loc, axis=1)                                       # [B, T, 1]
    z = jnp.sum(z_loc * jnp.exp(m_loc - m[:, None]), axis=1)         # [B, T, 1]

    # ---- Pass B: mixture log-probs per vocab tile (weight-stationary) ------
    mix_grid = pltpu.PrefetchScalarGridSpec(
        num_scalar_prefetch=0,
        grid=(n_vt, B, n_tt),
        in_specs=[
            pl.BlockSpec((1, tt, D), lambda v, b, t: (b, t, 0)),     # seq (bf16)
            pl.BlockSpec((D, tv), lambda v, b, t: (0, v)),           # lm_head W^T
            pl.BlockSpec((1, tt, S), lambda v, b, t: (b, t, 0)),     # mean x-attn
            pl.BlockSpec((1, S, 1), lambda v, b, t: (b, 0, 0)),      # input_ids
            pl.BlockSpec((1, tt, 1), lambda v, b, t: (b, t, 0)),     # m
            pl.BlockSpec((1, tt, 1), lambda v, b, t: (b, t, 0)),     # Z
            pl.BlockSpec((1, tt, 1), lambda v, b, t: (b, t, 0)),     # p_copy
        ],
        out_specs=pl.BlockSpec((1, tt, tv), lambda v, b, t: (b, t, v)),
    )
    logp = pl.pallas_call(
        mixture_logp_kernel,
        out_shape=jax.ShapeDtypeStruct((B, T, V), jnp.float32),
        grid_spec=mix_grid,
        compiler_params=pltpu.CompilerParams(
            dimension_semantics=("parallel", "parallel", "parallel")),
    )(seq_bf16, w_lm_bf16, xattn_mean, ids3, m, z, p_copy)

    # ---- NLLLoss(ignore_index=-100), mean over valid tokens (XLA glue) -----
    lbl = labels.astype(jnp.int32)
    valid = lbl != -100
    lbl_safe = jnp.where(valid, lbl, 0)
    picked = jnp.take_along_axis(logp, lbl_safe[..., None], axis=-1)[..., 0]
    nll = jnp.where(valid, -picked, 0.0)
    count = jnp.sum(valid.astype(jnp.float32))
    loss = jnp.sum(nll) / jnp.maximum(count, 1.0)
    return loss, logp


# ---------------------------------------------------------------------------
# Pure-JAX reference (f32) of MT5Copy head + NLLLoss, for a correctness check.
# ---------------------------------------------------------------------------
def reference_head_loss(seq_out, w_lm_t, w_copy, b_copy, cross_attn,
                        input_ids, labels):
    B, T, D = seq_out.shape
    V = w_lm_t.shape[1]
    scale = float(D) ** -0.5
    seq = seq_out.astype(jnp.float32) * scale
    lm_logits = jnp.einsum('btd,dv->btv', seq, w_lm_t.astype(jnp.float32))
    xattn = jnp.mean(cross_attn.astype(jnp.float32), axis=1)         # [B, T, S]
    p_copy = jax.nn.sigmoid(
        jnp.einsum('btd,d->bt', seq, w_copy.reshape(D)) + b_copy[0])[..., None]
    gen = jax.nn.softmax(lm_logits, axis=-1) * (1.0 - p_copy)
    one_hot = jax.nn.one_hot(input_ids, V, dtype=jnp.float32)        # [B, S, V]
    copy = jnp.einsum('bts,bsv->btv', xattn * p_copy, one_hot)
    logp = jnp.log(gen + copy + 1e-07)
    lbl = labels.astype(jnp.int32)
    valid = lbl != -100
    picked = jnp.take_along_axis(logp, jnp.where(valid, lbl, 0)[..., None],
                                 axis=-1)[..., 0]
    loss = (jnp.sum(jnp.where(valid, -picked, 0.0))
            / jnp.maximum(jnp.sum(valid.astype(jnp.float32)), 1.0))
    return loss, logp


if __name__ == "__main__":
    # Small deterministic shapes consistent with the forward pass.
    # V=256 with tv=128 exercises the V-tiled two-pass softmax (2 vocab tiles).
    B, T, S, D, H, V = 2, 8, 16, 32, 4, 256

    key = jax.random.PRNGKey(0)
    k_seq, k_wlm, k_wc, k_bc, k_att, k_ids, k_lbl, k_msk = jax.random.split(key, 8)

    # Synthetic decoder sequence_output and last-layer cross attentions
    # (softmax over source positions, as real attention probs would be).
    seq_out = jax.random.normal(k_seq, (B, T, D), dtype=jnp.float32)
    attn_scores = jax.random.normal(k_att, (B, H, T, S), dtype=jnp.float32)
    cross_attn = jax.nn.softmax(attn_scores, axis=-1)

    # Parameters (shapes from MT5Copy.__init__):
    #   lm_head: Linear(model_dim, vocab, bias=False) -> weight [V, D]
    #   linear_copy: Linear(model_dim, 1) -> weight [1, D], bias [1]
    w_lm_t = (jax.random.normal(k_wlm, (V, D), dtype=jnp.float32)
              / jnp.sqrt(D)).T                                      # [D, V]
    w_copy = jax.random.normal(k_wc, (1, D), dtype=jnp.float32) / jnp.sqrt(D)
    b_copy = jax.random.normal(k_bc, (1,), dtype=jnp.float32)

    # Encoder input ids and labels (some labels ignored with -100).
    input_ids = jax.random.randint(k_ids, (B, S), 0, V, dtype=jnp.int32)
    labels = jax.random.randint(k_lbl, (B, T), 0, V, dtype=jnp.int32)
    ignore = jax.random.bernoulli(k_msk, 0.25, (B, T))
    labels = jnp.where(ignore, -100, labels)

    run = jax.jit(lambda *a: mt5copy_head_loss(*a, tv=128, tt=8))
    loss, logp = run(seq_out, w_lm_t, w_copy, b_copy, cross_attn,
                     input_ids, labels)
    jax.block_until_ready((loss, logp))

    assert logp.shape == (B, T, V)
    assert loss.shape == ()
    assert bool(jnp.isfinite(loss))
    assert bool(jnp.all(jnp.isfinite(logp)))

    # Correctness vs. pure-JAX f32 reference (bf16 MXU operands -> loose tol).
    loss_ref, logp_ref = reference_head_loss(
        seq_out, w_lm_t, w_copy, b_copy, cross_attn, input_ids, labels)
    assert bool(jnp.max(jnp.abs(logp - logp_ref)) < 5e-2)
    assert bool(jnp.abs(loss - loss_ref) < 5e-2)

    print("KERNEL_OK")
</pallas_src>

<mosaic_0001>
module attributes {stable_mosaic.version = 11 : i64} {
  func.func @local_softmax_stats_kernel(%arg0: i32, %arg1: i32, %arg2: i32, %arg3: memref<1x8x32xbf16, #tpu.memory_space<vmem>>, %arg4: memref<32x128xbf16, #tpu.memory_space<vmem>>, %arg5: memref<1x1x8x1xf32, #tpu.memory_space<vmem>>, %arg6: memref<1x1x8x1xf32, #tpu.memory_space<vmem>>) attributes {dimension_semantics = [#tpu.dimension_semantics<parallel>, #tpu.dimension_semantics<parallel>, #tpu.dimension_semantics<parallel>], iteration_bounds = array<i64: 2, 2, 1>, scalar_prefetch = 0 : i64, scratch_operands = 0 : i64, tpu.core_type = #tpu.core_type<tc>, window_params = [{transform_indices = @transform_0, window_bounds = array<i64: 1, 8, 32>}, {transform_indices = @transform_1, window_bounds = array<i64: 32, 128>}, {transform_indices = @transform_2, window_bounds = array<i64: 1, 1, 8, 1>}, {transform_indices = @transform_3, window_bounds = array<i64: 1, 1, 8, 1>}]} {
    %c0 = arith.constant 0 : index
    %c0_0 = arith.constant 0 : index
    %c0_1 = arith.constant 0 : index
    %0 = vector.load %arg3[%c0, %c0_0, %c0_1] : memref<1x8x32xbf16, #tpu.memory_space<vmem>>, vector<1x8x32xbf16>
    %1 = vector.shape_cast %0 : vector<1x8x32xbf16> to vector<8x32xbf16>
    %c0_2 = arith.constant 0 : index
    %c0_3 = arith.constant 0 : index
    %2 = vector.load %arg4[%c0_2, %c0_3] : memref<32x128xbf16, #tpu.memory_space<vmem>>, vector<32x128xbf16>
    %cst = arith.constant dense<0.000000e+00> : vector<8x128xf32>
    %3 = tpu.matmul %1, %2, %cst {dimension_numbers = #tpu.dot_dimension_numbers<[1], [0], [0], [1], [0, 0, 1, 1], [], []>} : vector<8x32xbf16>, vector<32x128xbf16>, vector<8x128xf32> -> vector<8x128xf32>
    %cst_4 = arith.constant dense<0xFF800000> : vector<8xf32>
    %4 = vector.multi_reduction <maximumf>, %3, %cst_4 [1] : vector<8x128xf32> to vector<8xf32>
    %5 = vector.shape_cast %4 : vector<8xf32> to vector<8x1xf32>
    %6 = vector.broadcast %5 : vector<8x1xf32> to vector<8x128xf32>
    %7 = arith.subf %3, %6 : vector<8x128xf32>
    %8 = math.exp %7 : vector<8x128xf32>
    %cst_5 = arith.constant dense<0.000000e+00> : vector<8xf32>
    %9 = vector.multi_reduction <add>, %8, %cst_5 [1] : vector<8x128xf32> to vector<8xf32>
    %10 = vector.shape_cast %9 : vector<8xf32> to vector<8x1xf32>
    %c0_6 = arith.constant 0 : index
    %c0_7 = arith.constant 0 : index
    %c0_8 = arith.constant 0 : index
    %c0_9 = arith.constant 0 : index
    %11 = vector.load %arg5[%c0_6, %c0_7, %c0_8, %c0_9] : memref<1x1x8x1xf32, #tpu.memory_space<vmem>>, vector<1x1x8x1xf32>
    %12 = vector.shape_cast %11 : vector<1x1x8x1xf32> to vector<8x1xf32>
    %13 = vector.shape_cast %5 : vector<8x1xf32> to vector<1x1x8x1xf32>
    tpu.vector_store %arg5[%c0_6, %c0_7, %c0_8, %c0_9], %13 {strides = array<i32>} : memref<1x1x8x1xf32, #tpu.memory_space<vmem>>, vector<1x1x8x1xf32>,
    %c0_10 = arith.constant 0 : index
    %c0_11 = arith.constant 0 : index
    %c0_12 = arith.constant 0 : index
    %c0_13 = arith.constant 0 : index
    %14 = vector.load %arg6[%c0_10, %c0_11, %c0_12, %c0_13] : memref<1x1x8x1xf32, #tpu.memory_space<vmem>>, vector<1x1x8x1xf32>
    %15 = vector.shape_cast %14 : vector<1x1x8x1xf32> to vector<8x1xf32>
    %16 = vector.shape_cast %10 : vector<8x1xf32> to vector<1x1x8x1xf32>
    tpu.vector_store %arg6[%c0_10, %c0_11, %c0_12, %c0_13], %16 {strides = array<i32>} : memref<1x1x8x1xf32, #tpu.memory_space<vmem>>, vector<1x1x8x1xf32>,
    return
  }
  func.func @transform_0(%arg0: i32, %arg1: i32, %arg2: i32) -> (i32, i32, i32) {
    %c0_i32 = arith.constant 0 : i32
    %c0_i32_0 = arith.constant 0 : i32
    return %arg1, %arg2, %c0_i32 : i32, i32, i32
  }
  func.func @transform_1(%arg0: i32, %arg1: i32, %arg2: i32) -> (i32, i32) {
    %c0_i32 = arith.constant 0 : i32
    %c0_i32_0 = arith.constant 0 : i32
    return %c0_i32, %arg0 : i32, i32
  }
  func.func @transform_2(%arg0: i32, %arg1: i32, %arg2: i32) -> (i32, i32, i32, i32) {
    %c0_i32 = arith.constant 0 : i32
    %c0_i32_0 = arith.constant 0 : i32
    return %arg1, %arg0, %arg2, %c0_i32 : i32, i32, i32, i32
  }
  func.func @transform_3(%arg0: i32, %arg1: i32, %arg2: i32) -> (i32, i32, i32, i32) {
    %c0_i32 = arith.constant 0 : i32
    %c0_i32_0 = arith.constant 0 : i32
    return %arg1, %arg0, %arg2, %c0_i32 : i32, i32, i32, i32
  }
}

module attributes {stable_mosaic.version = 11 : i64} {
  func.func @mixture_logp_kernel(%arg0: i32, %arg1: i32, %arg2: i32, %arg3: memref<1x8x32xbf16, #tpu.memory_space<vmem>>, %arg4: memref<32x128xbf16, #tpu.memory_space<vmem>>, %arg5: memref<1x8x16xf32, #tpu.memory_space<vmem>>, %arg6: memref<1x16x1xi32, #tpu.memory_space<vmem>>, %arg7: memref<1x8x1xf32, #tpu.memory_space<vmem>>, %arg8: memref<1x8x1xf32, #tpu.memory_space<vmem>>, %arg9: memref<1x8x1xf32, #tpu.memory_space<vmem>>, %arg10: memref<1x8x128xf32, #tpu.memory_space<vmem>>) attributes {dimension_semantics = [#tpu.dimension_semantics<parallel>, #tpu.dimension_semantics<parallel>, #tpu.dimension_semantics<parallel>], iteration_bounds = array<i64: 2, 2, 1>, scalar_prefetch = 0 : i64, scratch_operands = 0 : i64, tpu.core_type = #tpu.core_type<tc>, window_params = [{transform_indices = @transform_0, window_bounds = array<i64: 1, 8, 32>}, {transform_indices = @transform_1, window_bounds = array<i64: 32, 128>}, {transform_indices = @transform_2, window_bounds = array<i64: 1, 8, 16>}, {transform_indices = @transform_3, window_bounds = array<i64: 1, 16, 1>}, {transform_indices = @transform_4, window_bounds = array<i64: 1, 8, 1>}, {transform_indices = @transform_5, window_bounds = array<i64: 1, 8, 1>}, {transform_indices = @transform_6, window_bounds = array<i64: 1, 8, 1>}, {transform_indices = @transform_7, window_bounds = array<i64: 1, 8, 128>}]} {
    %c128_i32 = arith.constant 128 : i32
    %0 = arith.muli %arg0, %c128_i32 : i32
    %c0 = arith.constant 0 : index
    %c0_0 = arith.constant 0 : index
    %c0_1 = arith.constant 0 : index
    %1 = vector.load %arg3[%c0, %c0_0, %c0_1] : memref<1x8x32xbf16, #tpu.memory_space<vmem>>, vector<1x8x32xbf16>
    %2 = vector.shape_cast %1 : vector<1x8x32xbf16> to vector<8x32xbf16>
    %c0_2 = arith.constant 0 : index
    %c0_3 = arith.constant 0 : index
    %3 = vector.load %arg4[%c0_2, %c0_3] : memref<32x128xbf16, #tpu.memory_space<vmem>>, vector<32x128xbf16>
    %cst = arith.constant dense<0.000000e+00> : vector<8x128xf32>
    %4 = tpu.matmul %2, %3, %cst {dimension_numbers = #tpu.dot_dimension_numbers<[1], [0], [0], [1], [0, 0, 1, 1], [], []>} : vector<8x32xbf16>, vector<32x128xbf16>, vector<8x128xf32> -> vector<8x128xf32>
    %c0_4 = arith.constant 0 : index
    %c0_5 = arith.constant 0 : index
    %c0_6 = arith.constant 0 : index
    %5 = vector.load %arg9[%c0_4, %c0_5, %c0_6] : memref<1x8x1xf32, #tpu.memory_space<vmem>>, vector<1x8x1xf32>
    %6 = vector.shape_cast %5 : vector<1x8x1xf32> to vector<8x1xf32>
    %c0_7 = arith.constant 0 : index
    %c0_8 = arith.constant 0 : index
    %c0_9 = arith.constant 0 : index
    %7 = vector.load %arg8[%c0_7, %c0_8, %c0_9] : memref<1x8x1xf32, #tpu.memory_space<vmem>>, vector<1x8x1xf32>
    %8 = vector.shape_cast %7 : vector<1x8x1xf32> to vector<8x1xf32>
    %9 = tpu.reciprocal %8 {approx = true} : vector<8x1xf32> -> vector<8x1xf32>
    %c0_10 = arith.constant 0 : index
    %c0_11 = arith.constant 0 : index
    %c0_12 = arith.constant 0 : index
    %10 = vector.load %arg7[%c0_10, %c0_11, %c0_12] : memref<1x8x1xf32, #tpu.memory_space<vmem>>, vector<1x8x1xf32>
    %11 = vector.shape_cast %10 : vector<1x8x1xf32> to vector<8x1xf32>
    %12 = vector.broadcast %11 : vector<8x1xf32> to vector<8x128xf32>
    %13 = arith.subf %4, %12 : vector<8x128xf32>
    %14 = math.exp %13 : vector<8x128xf32>
    %cst_13 = arith.constant 1.000000e+00 : f32
    %15 = vector.broadcast %cst_13 : f32 to vector<8x1xf32>
    %16 = arith.subf %15, %6 : vector<8x1xf32>
    %17 = arith.mulf %16, %9 : vector<8x1xf32>
    %18 = vector.broadcast %17 : vector<8x1xf32> to vector<8x128xf32>
    %19 = arith.mulf %14, %18 : vector<8x128xf32>
    %c0_14 = arith.constant 0 : index
    %c0_15 = arith.constant 0 : index
    %c0_16 = arith.constant 0 : index
    %20 = vector.load %arg6[%c0_14, %c0_15, %c0_16] : memref<1x16x1xi32, #tpu.memory_space<vmem>>, vector<1x16x1xi32>
    %21 = vector.shape_cast %20 : vector<1x16x1xi32> to vector<16x1xi32>
    %22 = tpu.iota {dimensions = array<i32: 1>} : vector<16x128xi32>
    %23 = vector.broadcast %0 : i32 to vector<16x128xi32>
    %24 = arith.addi %22, %23 : vector<16x128xi32>
    %25 = vector.broadcast %21 : vector<16x1xi32> to vector<16x128xi32>
    %26 = arith.cmpi eq, %25, %24 : vector<16x128xi32>
    %27 = arith.extui %26 : vector<16x128xi1> to vector<16x128xi32>
    %28 = arith.sitofp %27 : vector<16x128xi32> to vector<16x128xf32>
    %29 = arith.truncf %28 : vector<16x128xf32> to vector<16x128xbf16>
    %c0_17 = arith.constant 0 : index
    %c0_18 = arith.constant 0 : index
    %c0_19 = arith.constant 0 : index
    %30 = vector.load %arg5[%c0_17, %c0_18, %c0_19] : memref<1x8x16xf32, #tpu.memory_space<vmem>>, vector<1x8x16xf32>
    %31 = vector.shape_cast %30 : vector<1x8x16xf32> to vector<8x16xf32>
    %32 = vector.broadcast %6 : vector<8x1xf32> to vector<8x16xf32>
    %33 = arith.mulf %31, %32 : vector<8x16xf32>
    %34 = arith.truncf %33 : vector<8x16xf32> to vector<8x16xbf16>
    %cst_20 = arith.constant dense<0.000000e+00> : vector<8x128xf32>
    %35 = tpu.matmul %34, %29, %cst_20 {dimension_numbers = #tpu.dot_dimension_numbers<[1], [0], [0], [1], [0, 0, 1, 1], [], []>} : vector<8x16xbf16>, vector<16x128xbf16>, vector<8x128xf32> -> vector<8x128xf32>
    %36 = arith.addf %19, %35 : vector<8x128xf32>
    %cst_21 = arith.constant 1.000000e-07 : f32
    %37 = vector.broadcast %cst_21 : f32 to vector<8x128xf32>
    %38 = arith.addf %36, %37 : vector<8x128xf32>
    %39 = math.log %38 : vector<8x128xf32>
    %c0_22 = arith.constant 0 : index
    %c0_23 = arith.constant 0 : index
    %c0_24 = arith.constant 0 : index
    %40 = vector.load %arg10[%c0_22, %c0_23, %c0_24] : memref<1x8x128xf32, #tpu.memory_space<vmem>>, vector<1x8x128xf32>
    %41 = vector.shape_cast %40 : vector<1x8x128xf32> to vector<8x128xf32>
    %42 = vector.shape_cast %39 : vector<8x128xf32> to vector<1x8x128xf32>
    tpu.vector_store %arg10[%c0_22, %c0_23, %c0_24], %42 {strides = array<i32>} : memref<1x8x128xf32, #tpu.memory_space<vmem>>, vector<1x8x128xf32>,
    return
  }
  func.func @transform_0(%arg0: i32, %arg1: i32, %arg2: i32) -> (i32, i32, i32) {
    %c0_i32 = arith.constant 0 : i32
    %c0_i32_0 = arith.constant 0 : i32
    return %arg1, %arg2, %c0_i32 : i32, i32, i32
  }
  func.func @transform_1(%arg0: i32, %arg1: i32, %arg2: i32) -> (i32, i32) {
    %c0_i32 = arith.constant 0 : i32
    %c0_i32_0 = arith.constant 0 : i32
    return %c0_i32, %arg0 : i32, i32
  }
  func.func @transform_2(%arg0: i32, %arg1: i32, %arg2: i32) -> (i32, i32, i32) {
    %c0_i32 = arith.constant 0 : i32
    %c0_i32_0 = arith.constant 0 : i32
    return %arg1, %arg2, %c0_i32 : i32, i32, i32
  }
  func.func @transform_3(%arg0: i32, %arg1: i32, %arg2: i32) -> (i32, i32, i32) {
    %c0_i32 = arith.constant 0 : i32
    %c0_i32_0 = arith.constant 0 : i32
    %c0_i32_1 = arith.constant 0 : i32
    return %arg1, %c0_i32, %c0_i32_0 : i32, i32, i32
  }
  func.func @transform_4(%arg0: i32, %arg1: i32, %arg2: i32) -> (i32, i32, i32) {
    %c0_i32 = arith.constant 0 : i32
    %c0_i32_0 = arith.constant 0 : i32
    return %arg1, %arg2, %c0_i32 : i32, i32, i32
  }
  func.func @transform_5(%arg0: i32, %arg1: i32, %arg2: i32) -> (i32, i32, i32) {
    %c0_i32 = arith.constant 0 : i32
    %c0_i32_0 = arith.constant 0 : i32
    return %arg1, %arg2, %c0_i32 : i32, i32, i32
  }
  func.func @transform_6(%arg0: i32, %arg1: i32, %arg2: i32) -> (i32, i32, i32) {
    %c0_i32 = arith.constant 0 : i32
    %c0_i32_0 = arith.constant 0 : i32
    return %arg1, %arg2, %c0_i32 : i32, i32, i32
  }
  func.func @transform_7(%arg0: i32, %arg1: i32, %arg2: i32) -> (i32, i32, i32) {
    %c0_i32 = arith.constant 0 : i32
    return %arg1, %arg2, %arg0 : i32, i32, i32
  }
}

</mosaic_0001>

<llo_original>
// kernel: _lambda_.2
$region0: #{_lambda_.2}
  #allocation0 [shape = 'u32[]', space=smem, size = 0x4, offset = 0x4, fixed_abs, tag = 'smem constant byte address 0x4 - core index']
  #allocation1 [shape = 'u32[144,128]{1,0:T(1,128)}', space=vmem, size = 0x12000, scoped, tag = 'internal scratch']
  %s0 = inlined_call_operand.vmem [shape: bf16[2,8,32], index: 0, kind: input, shape index: {}]
  %s1 = inlined_call_operand.vmem [shape: bf16[32,256], index: 1, kind: input, shape index: {}]
  %s2 = inlined_call_operand.vmem [shape: f32[2,2,8,1], index: 2, kind: output, shape index: {0}]
  %s3 = inlined_call_operand.vmem [shape: f32[2,2,8,1], index: 3, kind: output, shape index: {1}]
  %4 = xla_tuple %s2, %s3
  %s5 = sld [smem:[#allocation0]]
  $region90: #{_lambda_.2} parent=0
    _
  %s7 = ssub.s32 1, %s5
  %s8 = scalar_select 0, %s7, %s5
  $region1: #{_lambda_.2} parent=0
    #allocation2 [shape = 'u8[16384]{0}', space=vmem, size = 0x4000, scoped, tag = 'input window, operand 1']
    loop: start=0, step=1, limit=6
    $region2: #{_lambda_.2} parent=1 // loop_pre_header
      _
    $region3: #{_lambda_.2} parent=1 // loop_header
      %s10 = sphi 0, %s14
      %p11 = scmp.ge.s32.totalorder %s10, 6
      %s17 = sphi 0, %s36
      %s18 = sphi 0, %s32
      %s19 = sphi 0, %s28
      %s20 = sphi 0, %s17
      %s21 = sphi 0, %s18
      %s22 = sphi 0, %s19
      %s23 = sphi 0, %s20
      %s24 = sphi 0, %s21
      %s25 = sphi 0, %s22
      %s41 = sphi 0, %s43
      %s44 = sphi 0, %s41
      %s45 = sphi 0, %s44
      %s61 = sphi 0, %s45
      %s67 = sphi 0, %s69
      %s70 = sphi 0, %s67
      %s71 = sphi 0, %s70
      %s87 = sphi 0, %s71
      %s97 = sphi 0, %s99
      %s100 = sphi 0, %s97
      %s101 = sphi 0, %s100
      %s117 = sphi 0, %s101
      %s127 = sphi 0, %s129
      %s130 = sphi 0, %s127
      %s131 = sphi 0, %s130
      %s147 = sphi 0, %s131
    $region4: #{_lambda_.2} parent=1 // loop_header_branch
      %13 = sbr.rel (%p11) target = $region8
    $region5: #{_lambda_.2} parent=1 // loop_body
      %s15 = ssub.s32 %s10, 1
      %s16 = ssub.s32 %s10, 2
      %s26 = sadd.s32 1, %s19
      %p27 = scmp.ge.s32.totalorder %s26, 1
      %s28 = scalar_select %p27, 0, %s26
      %s29 = sadd.s32 1, %s18
      %s30 = scalar_select %p27, %s29, %s18
      %p31 = scmp.ge.s32.totalorder %s30, 2
      %s32 = scalar_select %p31, 0, %s30
      %s33 = sadd.s32 1, %s17
      %s34 = scalar_select %p31, %s33, %s17
      %p35 = scmp.ge.s32.totalorder %s34, 2
      %s36 = scalar_select %p35, 0, %s34
      %s37 = ssub.s32 %s18, %s32
      %s38 = ssub.s32 %s19, %s28
      %s39 = sor.u32 %s37, %s38
      %p40 = scmp.eq.s32.totalorder %s39, 0
      %s42 = sadd.s32 %s41, 1
      %s43 = scalar_select %p40, %s41, %s42
      %p46 = pneg %p40
      %p47 = scmp.eq.s32.totalorder %s10, 3
      %p48 = por %p46, %p47
      %p49 = scmp.ne.s32.totalorder %s41, %s44
      %p50 = scmp.eq.s32.totalorder %s10, 0
      %p51 = por %p49, %p50
      %p52 = scmp.ne.s32.totalorder %s41, %s44
      %p53 = scmp.eq.s32.totalorder %s15, 3
      %p54 = por %p52, %p53
      %p55 = scmp.ne.s32.totalorder %s44, %s45
      %p56 = scmp.eq.s32.totalorder %s15, 0
      %p57 = por %p55, %p56
      %p58 = scmp.ne.s32.totalorder %s44, %s45
      %p59 = scmp.eq.s32.totalorder %s16, 3
      %p60 = por %p58, %p59
      %p62 = scmp.ne.s32.totalorder %s45, %s61
      %p63 = scmp.eq.s32.totalorder %s16, 0
      %p64 = por %p62, %p63
      %s65 = ssub.s32 %s17, %s36
      %p66 = scmp.eq.s32.totalorder %s65, 0
      %s68 = sadd.s32 %s67, 1
      %s69 = scalar_select %p66, %s67, %s68
      %p72 = pneg %p66
      %p73 = scmp.eq.s32.totalorder %s10, 3
      %p74 = por %p72, %p73
      %p75 = scmp.ne.s32.totalorder %s67, %s70
      %p76 = scmp.eq.s32.totalorder %s10, 0
      %p77 = por %p75, %p76
      %p78 = scmp.ne.s32.totalorder %s67, %s70
      %p79 = scmp.eq.s32.totalorder %s15, 3
      %p80 = por %p78, %p79
      %p81 = scmp.ne.s32.totalorder %s70, %s71
      %p82 = scmp.eq.s32.totalorder %s15, 0
      %p83 = por %p81, %p82
      %p84 = scmp.ne.s32.totalorder %s70, %s71
      %p85 = scmp.eq.s32.totalorder %s16, 3
      %p86 = por %p84, %p85
      %p88 = scmp.ne.s32.totalorder %s71, %s87
      %p89 = scmp.eq.s32.totalorder %s16, 0
      %p90 = por %p88, %p89
      %s91 = ssub.s32 %s18, %s32
      %s92 = ssub.s32 %s17, %s36
      %s93 = sor.u32 %s91, %s92
      %s94 = ssub.s32 %s19, %s28
      %s95 = sor.u32 %s93, %s94
      %p96 = scmp.eq.s32.totalorder %s95, 0
      %s98 = sadd.s32 %s97, 1
      %s99 = scalar_select %p96, %s97, %s98
      %p102 = pneg %p96
      %p103 = scmp.eq.s32.totalorder %s10, 3
      %p104 = por %p102, %p103
      %p105 = scmp.ne.s32.totalorder %s97, %s100
      %p106 = scmp.eq.s32.totalorder %s10, 0
      %p107 = por %p105, %p106
      %p108 = scmp.ne.s32.totalorder %s97, %s100
      %p109 = scmp.eq.s32.totalorder %s15, 3
      %p110 = por %p108, %p109
      %p111 = scmp.ne.s32.totalorder %s100, %s101
      %p112 = scmp.eq.s32.totalorder %s15, 0
      %p113 = por %p111, %p112
      %p114 = scmp.ne.s32.totalorder %s100, %s101
      %p115 = scmp.eq.s32.totalorder %s16, 3
      %p116 = por %p114, %p115
      %p118 = scmp.ne.s32.totalorder %s101, %s117
      %p119 = scmp.eq.s32.totalorder %s16, 0
      %p120 = por %p118, %p119
      %s121 = ssub.s32 %s18, %s32
      %s122 = ssub.s32 %s17, %s36
      %s123 = sor.u32 %s121, %s122
      %s124 = ssub.s32 %s19, %s28
      %s125 = sor.u32 %s123, %s124
      %p126 = scmp.eq.s32.totalorder %s125, 0
      %s128 = sadd.s32 %s127, 1
      %s129 = scalar_select %p126, %s127, %s128
      %p132 = pneg %p126
      %p133 = scmp.eq.s32.totalorder %s10, 3
      %p134 = por %p132, %p133
      %p135 = scmp.ne.s32.totalorder %s127, %s130
      %p136 = scmp.eq.s32.totalorder %s10, 0
      %p137 = por %p135, %p136
      %p138 = scmp.ne.s32.totalorder %s127, %s130
      %p139 = scmp.eq.s32.totalorder %s15, 3
      %p140 = por %p138, %p139
      %p141 = scmp.ne.s32.totalorder %s130, %s131
      %p142 = scmp.eq.s32.totalorder %s15, 0
      %p143 = por %p141, %p142
      %p144 = scmp.ne.s32.totalorder %s130, %s131
      %p145 = scmp.eq.s32.totalorder %s16, 3
      %p146 = por %p144, %p145
      %p148 = scmp.ne.s32.totalorder %s131, %s147
      %p149 = scmp.eq.s32.totalorder %s16, 0
      %p150 = por %p148, %p149
      %p151 = scmp.le.s32.totalorder 1, %s10
      %p152 = scmp.lt.s32.totalorder %s10, 5
      %p153 = pnand %p151, %p152
      %p154 = pneg %p153
      // Predicated region
      $region9: #{_lambda_.2} parent=5 // pred_check
        _
      $region10: #{_lambda_.2} parent=5 // pred_check_branch
        %156 = sbr.rel (%p153) target = $region12
      $region11: #{_lambda_.2} parent=5 // pred_region
        %s157 = ssub.s32 %s10, 1
      $region12: #{_lambda_.2} parent=5 // pred_fallthru
        _
      %p158 = scmp.lt.s32.totalorder %s10, 4
      // Predicated region
      $region13: #{_lambda_.2} parent=5 // pred_check
        %p159 = pneg %p158
      $region14: #{_lambda_.2} parent=5 // pred_check_branch
        %161 = sbr.rel (%p159) target = $region16
      $region15: #{_lambda_.2} parent=5 // pred_region
        // Predicated region
        $region17: #{_lambda_.2} parent=15 // pred_check
          %p162 = pneg %p51
        $region18: #{_lambda_.2} parent=15 // pred_check_branch
          %164 = sbr.rel (%p162) target = $region20
        $region19: #{_lambda_.2} parent=15 // pred_region
          %p165 = scmp.lt.s32.totalorder %s18, 1
          %s166 = scalar_select %p165, %s18, 1
          %p167 = scmp.lt.s32.totalorder %s19, 0
          %s168 = scalar_select %p167, %s19, 0
          %s169 = sadd.s32 %s168, %s166
          %s170 = smul.addr %s169, 4
          %s171 = scalar_lea.vmem %s0, %s170
        $region20: #{_lambda_.2} parent=15 // pred_fallthru
          _
        // Predicated region
        $region21: #{_lambda_.2} parent=15 // pred_check
          %p172 = pneg %p77
        $region22: #{_lambda_.2} parent=15 // pred_check_branch
          %174 = sbr.rel (%p172) target = $region24
        $region23: #{_lambda_.2} parent=15 // pred_region
          %s175 = sand.u32 %s67, 1
          %s176 = sand.u32 %s67, 1
          %s177 = smul.addr %s176, 16
          %s178 = scalar_lea.vmem [#allocation2], %s177
          %s179 = smul.addr %s17, 4
          %s180 = scalar_lea.vmem %s1, %s179
          // Predicated region
          $region25: #{_lambda_.2} parent=23 // pred_check
            _
          $region26: #{_lambda_.2} parent=23 // pred_check_branch
            %182 = sbr.rel (0) target = $region28
          $region27: #{_lambda_.2} parent=23 // pred_region
            // Predicated region
            $region29: #{_lambda_.2} parent=27 // pred_check
              _
            $region30: #{_lambda_.2} parent=27 // pred_check_branch
              %184 = sbr.rel target = $region32
            $region31: #{_lambda_.2} parent=27 // pred_region
              // Predicated region
              $region44: #{_lambda_.2} parent=31 // pred_check
                _
              $region45: #{_lambda_.2} parent=31 // pred_check_branch
                %205 = sbr.rel (0) target = $region47
              $region46: #{_lambda_.2} parent=31 // pred_region
                loop: start=0, step=1, limit=1
                $region48: #{_lambda_.2} parent=46 // loop_pre_header
                  _
                $region49: #{_lambda_.2} parent=46 // loop_header
                  %s207 = sphi 0, %s211
                  %p208 = scmp.ge.s32.totalorder %s207, 1
                  %s212 = sphi %s180, %s180
                  %s213 = sphi %s178, %s178
                $region50: #{_lambda_.2} parent=46 // loop_header_branch
                  %210 = sbr.rel (%p208) target = $region54
                $region51: #{_lambda_.2} parent=46 // loop_body
                  _
                $region52: #{_lambda_.2} parent=46 // loop_footer
                  %s211 = sadd.s32 1, %s207
                $region53: #{_lambda_.2} parent=46 // loop_footer_branch
                  %206 = sbr.rel target = $region49
                $region54: #{_lambda_.2} parent=46 // loop_exit
                  _
                loop: start=0, step=1, limit=1
                $region55: #{_lambda_.2} parent=46 // loop_pre_header
                  _
                $region56: #{_lambda_.2} parent=46 // loop_header
                  %s216 = sphi 0, %s220
                  %p217 = scmp.ge.s32.totalorder %s216, 1
                  %s221 = sphi %s180, %s180
                  %s222 = sphi %s178, %s178
                $region57: #{_lambda_.2} parent=46 // loop_header_branch
                  %219 = sbr.rel (%p217) target = $region61
                $region58: #{_lambda_.2} parent=46 // loop_body
                  %v223 = vld [vmem:[%s221] sm:$0xf]
                  %224 = vst [vmem:[%s222] sm:$0xf] %v223
                  %v225 = vld [vmem:[%s221 + $0x8] sm:$0xf]
                  %226 = vst [vmem:[%s222 + $0x4] sm:$0xf] %v225
                  %v227 = vld [vmem:[%s221 + $0x10] sm:$0xf]
                  %228 = vst [vmem:[%s222 + $0x8] sm:$0xf] %v227
                  %v229 = vld [vmem:[%s221 + $0x18] sm:$0xf]
                  %230 = vst [vmem:[%s222 + $0xc] sm:$0xf] %v229
                $region59: #{_lambda_.2} parent=46 // loop_footer
                  %s220 = sadd.s32 1, %s216
                $region60: #{_lambda_.2} parent=46 // loop_footer_branch
                  %215 = sbr.rel target = $region56
                $region61: #{_lambda_.2} parent=46 // loop_exit
                  _
              $region47: #{_lambda_.2} parent=31 // pred_fallthru
                _
            $region32: #{_lambda_.2} parent=27 // pred_fallthru
              _
            // Predicated region
            $region33: #{_lambda_.2} parent=27 // pred_check
              _
            $region34: #{_lambda_.2} parent=27 // pred_check_branch
              %186 = sbr.rel (0) target = $region36
            $region35: #{_lambda_.2} parent=27 // pred_region
              loop: start=0, step=1, limit=1
              $region37: #{_lambda_.2} parent=35 // loop_pre_header
                _
              $region38: #{_lambda_.2} parent=35 // loop_header
                %s189 = sphi 0, %s193
                %p190 = scmp.ge.s32.totalorder %s189, 1
                %s194 = sphi %s180, %s180
                %s195 = sphi %s178, %s178
              $region39: #{_lambda_.2} parent=35 // loop_header_branch
                %192 = sbr.rel (%p190) target = $region43
              $region40: #{_lambda_.2} parent=35 // loop_body
                %v196 = vld [vmem:[%s194] sm:$0xf]
                %197 = vst [vmem:[%s195] sm:$0xf] %v196
                %v198 = vld [vmem:[%s194 + $0x8] sm:$0xf]
                %199 = vst [vmem:[%s195 + $0x4] sm:$0xf] %v198
                %v200 = vld [vmem:[%s194 + $0x10] sm:$0xf]
                %201 = vst [vmem:[%s195 + $0x8] sm:$0xf] %v200
                %v202 = vld [vmem:[%s194 + $0x18] sm:$0xf]
                %203 = vst [vmem:[%s195 + $0xc] sm:$0xf] %v202
              $region41: #{_lambda_.2} parent=35 // loop_footer
                %s193 = sadd.s32 1, %s189
              $region42: #{_lambda_.2} parent=35 // loop_footer_branch
                %188 = sbr.rel target = $region38
              $region43: #{_lambda_.2} parent=35 // loop_exit
                _
            $region36: #{_lambda_.2} parent=27 // pred_fallthru
              _
          $region28: #{_lambda_.2} parent=23 // pred_fallthru
            _
          %231 = vnop
        $region24: #{_lambda_.2} parent=15 // pred_fallthru
          _
      $region16: #{_lambda_.2} parent=5 // pred_fallthru
        _
      %p232 = scmp.le.s32.totalorder 1, %s10
      %p233 = scmp.lt.s32.totalorder %s10, 5
      %p234 = pnand %p232, %p233
      %p235 = pneg %p234
      // Predicated region
      $region62: #{_lambda_.2} parent=5 // pred_check
        _
      $region63: #{_lambda_.2} parent=5 // pred_check_branch
        %237 = sbr.rel (%p234) target = $region65
      $region64: #{_lambda_.2} parent=5 // pred_region
        %s238 = ssub.s32 %s10, 1
        %s239 = sand.u32 %s70, 1
        %s240 = sand.u32 %s70, 1
        %s241 = smul.addr %s240, 16
        %s242 = scalar_lea.vmem [#allocation2], %s241
        // Predicated region
        $region66: #{_lambda_.2} parent=64 // pred_check
          %p243 = pneg %p83
        $region67: #{_lambda_.2} parent=64 // pred_check_branch
          %245 = sbr.rel (%p243) target = $region69
        $region68: #{_lambda_.2} parent=64 // pred_region
          _
        $region69: #{_lambda_.2} parent=64 // pred_fallthru
          _
        %p246 = scmp.lt.s32.totalorder %s21, 1
        %s247 = scalar_select %p246, %s21, 1
        %p248 = scmp.lt.s32.totalorder %s22, 0
        %s249 = scalar_select %p248, %s22, 0
        %s250 = sadd.s32 %s249, %s247
        %s251 = smul.addr %s250, 4
        %s252 = scalar_lea.vmem %s0, %s251
        %p253 = pneg %p57
        %p254 = pneg %p54
        %s255 = sand.u32 %s70, 1
        %s256 = sand.u32 %s70, 1
        %s257 = smul.addr %s256, 16
        %s258 = scalar_lea.vmem [#allocation2], %s257
        %p259 = pneg %p83
        %p260 = pneg %p80
        %p261 = pneg %p113
        %p262 = pneg %p110
        %p263 = scmp.lt.s32.totalorder %s21, 1
        %s264 = scalar_select %p263, %s21, 1
        %p265 = scmp.lt.s32.totalorder %s20, 1
        %s266 = scalar_select %p265, %s20, 1
        %p267 = scmp.lt.s32.totalorder %s22, 0
        %s268 = scalar_select %p267, %s22, 0
        %s269 = sadd.s32 %s268, %s266
        %s270 = smul.addr %s264, 2
        %s271 = sadd.s32 %s269, %s270
        %s272 = smul.addr %s271, 8
        %s273 = scalar_lea.vmem %s2, %s272
        %p274 = pneg %p143
        %p275 = pneg %p140
        %p276 = scmp.lt.s32.totalorder %s21, 1
        %s277 = scalar_select %p276, %s21, 1
        %p278 = scmp.lt.s32.totalorder %s20, 1
        %s279 = scalar_select %p278, %s20, 1
        %p280 = scmp.lt.s32.totalorder %s22, 0
        %s281 = scalar_select %p280, %s22, 0
        %s282 = sadd.s32 %s281, %s279
        %s283 = smul.addr %s277, 2
        %s284 = sadd.s32 %s282, %s283
        %s285 = smul.addr %s284, 8
        %s286 = scalar_lea.vmem %s3, %s285
        %p287 = scmp.lt.s32.totalorder %s21, 1
        %s288 = scalar_select %p287, %s21, 1
        %p289 = scmp.lt.s32.totalorder %s22, 0
        %s290 = scalar_select %p289, %s22, 0
        %s291 = sadd.s32 %s290, %s288
        %s292 = smul.addr %s291, 4
        %s293 = scalar_lea.vmem %s0, %s292
        %p294 = scmp.lt.s32.totalorder %s21, 1
        %s295 = scalar_select %p294, %s21, 1
        %p296 = scmp.lt.s32.totalorder %s20, 1
        %s297 = scalar_select %p296, %s20, 1
        %p298 = scmp.lt.s32.totalorder %s22, 0
        %s299 = scalar_select %p298, %s22, 0
        %s300 = sadd.s32 %s299, %s297
        %s301 = smul.addr %s295, 2
        %s302 = sadd.s32 %s300, %s301
        %s303 = smul.addr %s302, 8
        %s304 = scalar_lea.vmem %s2, %s303
        %p305 = scmp.lt.s32.totalorder %s21, 1
        %s306 = scalar_select %p305, %s21, 1
        %p307 = scmp.lt.s32.totalorder %s20, 1
        %s308 = scalar_select %p307, %s20, 1
        %p309 = scmp.lt.s32.totalorder %s22, 0
        %s310 = scalar_select %p309, %s22, 0
        %s311 = sadd.s32 %s310, %s308
        %s312 = smul.addr %s306, 2
        %s313 = sadd.s32 %s311, %s312
        %s314 = smul.addr %s313, 8
        %s315 = scalar_lea.vmem %s3, %s314
        %v317 = vld [vmem:[%s293] sm:$0xf]
        %v318 = vld [vmem:[%s242] sm:$0xf]
        %v319 = vld [vmem:[%s242 + $0x4] sm:$0xf]
        %v320 = vld [vmem:[%s242 + $0x8] sm:$0xf]
        %v321 = vld [vmem:[%s242 + $0xc] sm:$0xf]
        %v326 = vunpack.c.l.b16 %v318
        %v327 = vunpack.c.l.b16 %v319
        %v328 = vunpack.c.l.b16 %v320
        %v329 = vunpack.c.l.b16 %v321
        %v330 = vpack.c.b16 %v327, %v326
        %v331 = vpack.c.b16 %v329, %v328
        %vm334 = vcmask 261120
        %v336 = vsel %vm334, %v317, 0
        %338 = vmatprep.subr.bf16.mxu0 0
        %339 = vmatpush1.bf16.msra.mxu0 %v330
        %340 = vmatprep.subr.bf16.mxu0 0
        %341 = vmatpush1.bf16.msra.mxu0 %v331
        %342 = vmatprep.subr.bf16.mxu0 0
        %343 = vmatpush1.bf16.msra.mxu0 0
        %344 = vmatprep.subr.bf16.mxu0 0
        %345 = vmatpush1.bf16.msra.mxu0 0
        %346 = vmatprep.subr.bf16.mxu0 0
        %347 = vmatpush1.bf16.msra.mxu0 0
        %348 = vmatprep.subr.bf16.mxu0 0
        %349 = vmatpush1.bf16.msra.mxu0 0
        %350 = vmatprep.subr.bf16.mxu0 0
        %351 = vmatpush1.bf16.msra.mxu0 0
        %352 = vmatprep.subr.bf16.mxu0 0
        %353 = vmatpush1.bf16.msra.mxu0 0
        %354 = vmatprep.subr.bf16.mxu0 0
        %355 = vmatpush1.bf16.msra.mxu0 0
        %356 = vmatprep.subr.bf16.mxu0 0
        %357 = vmatpush1.bf16.msra.mxu0 0
        %358 = vmatprep.subr.bf16.mxu0 0
        %359 = vmatpush1.bf16.msra.mxu0 0
        %360 = vmatprep.subr.bf16.mxu0 0
        %361 = vmatpush1.bf16.msra.mxu0 0
        %362 = vmatprep.subr.bf16.mxu0 0
        %363 = vmatpush1.bf16.msra.mxu0 0
        %364 = vmatprep.subr.bf16.mxu0 0
        %365 = vmatpush1.bf16.msra.mxu0 0
        %366 = vmatprep.subr.bf16.mxu0 0
        %367 = vmatpush1.bf16.msra.mxu0 0
        %368 = vmatprep.subr.bf16.mxu0 0
        %369 = vmatpush1.bf16.msra.mxu0 0
        %370 = vmatprep.mubr.bf16.mxu0 0
        %371 = vmatmul.mubr.bf16.gmra.mrb[0].mxu0 %v336
        %v372 = vpop.f32.mrb[0].mxu0
        %v373 = vadd.f32 0.0, %v372
        %v374 = vpop.f32.mrb[0].mxu0
        %v375 = vpop.f32.mrb[0].mxu0
        %v376 = vpop.f32.mrb[0].mxu0
        %377 = vdwg.mxu0
        %378 = vmax.xlane.f32.xlu0 %v373
        %v379 = vpop.xlane.xlu0 %378
        %v380 = vsub.f32 %v373, %v379
        %v381 = vmul.f32 %v380, 1.442695
        %v382 = vpow.pop %v381
        %383 = vadd.xlane.f32.xlu0 %v382
        %v384 = vpop.xlane.xlu0 %383
        %vm385 = vcmask 7168
        %386 = vst.msk [vmem:[%s304] sm:$0xff] %vm385, %v379
        %387 = vst.msk [vmem:[%s315] sm:$0xff] %vm385, %v384
        %p388 = scmp.lt.s32.totalorder %s21, 1
        %s389 = scalar_select %p388, %s21, 1
        %p390 = scmp.lt.s32.totalorder %s20, 1
        %s391 = scalar_select %p390, %s20, 1
        %p392 = scmp.lt.s32.totalorder %s22, 0
        %s393 = scalar_select %p392, %s22, 0
        %s394 = sadd.s32 %s393, %s391
        %s395 = smul.addr %s389, 2
        %s396 = sadd.s32 %s394, %s395
        %s397 = smul.addr %s396, 8
        %s398 = scalar_lea.vmem %s2, %s397
        %p399 = scmp.lt.s32.totalorder %s21, 1
        %s400 = scalar_select %p399, %s21, 1
        %p401 = scmp.lt.s32.totalorder %s20, 1
        %s402 = scalar_select %p401, %s20, 1
        %p403 = scmp.lt.s32.totalorder %s22, 0
        %s404 = scalar_select %p403, %s22, 0
        %s405 = sadd.s32 %s404, %s402
        %s406 = smul.addr %s400, 2
        %s407 = sadd.s32 %s405, %s406
        %s408 = smul.addr %s407, 8
        %s409 = scalar_lea.vmem %s3, %s408
        // Predicated region
        $region70: #{_lambda_.2} parent=64 // pred_check
          %p410 = pneg %p110
        $region71: #{_lambda_.2} parent=64 // pred_check_branch
          %412 = sbr.rel (%p410) target = $region73
        $region72: #{_lambda_.2} parent=64 // pred_region
          _
        $region73: #{_lambda_.2} parent=64 // pred_fallthru
          _
        // Predicated region
        $region74: #{_lambda_.2} parent=64 // pred_check
          %p413 = pneg %p140
        $region75: #{_lambda_.2} parent=64 // pred_check_branch
          %415 = sbr.rel (%p413) target = $region77
        $region76: #{_lambda_.2} parent=64 // pred_region
          _
        $region77: #{_lambda_.2} parent=64 // pred_fallthru
          _
      $region65: #{_lambda_.2} parent=5 // pred_fallthru
        _
      %p416 = scmp.le.s32.totalorder 2, %s10
      // Predicated region
      $region78: #{_lambda_.2} parent=5 // pred_check
        %p417 = pneg %p416
      $region79: #{_lambda_.2} parent=5 // pred_check_branch
        %419 = sbr.rel (%p417) target = $region81
      $region80: #{_lambda_.2} parent=5 // pred_region
        %s420 = ssub.s32 %s10, 2
        // Predicated region
        $region82: #{_lambda_.2} parent=80 // pred_check
          %p421 = pneg %p116
        $region83: #{_lambda_.2} parent=80 // pred_check_branch
          %423 = sbr.rel (%p421) target = $region85
        $region84: #{_lambda_.2} parent=80 // pred_region
          %p424 = scmp.lt.s32.totalorder %s24, 1
          %s425 = scalar_select %p424, %s24, 1
          %p426 = scmp.lt.s32.totalorder %s23, 1
          %s427 = scalar_select %p426, %s23, 1
          %p428 = scmp.lt.s32.totalorder %s25, 0
          %s429 = scalar_select %p428, %s25, 0
          %s430 = sadd.s32 %s429, %s427
          %s431 = smul.addr %s425, 2
          %s432 = sadd.s32 %s430, %s431
          %s433 = smul.addr %s432, 8
          %s434 = scalar_lea.vmem %s2, %s433
        $region85: #{_lambda_.2} parent=80 // pred_fallthru
          _
        // Predicated region
        $region86: #{_lambda_.2} parent=80 // pred_check
          %p435 = pneg %p146
        $region87: #{_lambda_.2} parent=80 // pred_check_branch
          %437 = sbr.rel (%p435) target = $region89
        $region88: #{_lambda_.2} parent=80 // pred_region
          %p438 = scmp.lt.s32.totalorder %s24, 1
          %s439 = scalar_select %p438, %s24, 1
          %p440 = scmp.lt.s32.totalorder %s23, 1
          %s441 = scalar_select %p440, %s23, 1
          %p442 = scmp.lt.s32.totalorder %s25, 0
          %s443 = scalar_select %p442, %s25, 0
          %s444 = sadd.s32 %s443, %s441
          %s445 = smul.addr %s439, 2
          %s446 = sadd.s32 %s444, %s445
          %s447 = smul.addr %s446, 8
          %s448 = scalar_lea.vmem %s3, %s447
        $region89: #{_lambda_.2} parent=80 // pred_fallthru
          _
      $region81: #{_lambda_.2} parent=5 // pred_fallthru
        _
    $region6: #{_lambda_.2} parent=1 // loop_footer
      %s14 = sadd.s32 1, %s10
    $region7: #{_lambda_.2} parent=1 // loop_footer_branch
      %9 = sbr.rel target = $region3
    $region8: #{_lambda_.2} parent=1 // loop_exit
      _

// kernel: _lambda_.3
$region0: #{_lambda_.3}
  #allocation0 [shape = 'u32[]', space=smem, size = 0x4, offset = 0x4, fixed_abs, tag = 'smem constant byte address 0x4 - core index']
  #allocation1 [shape = 'u32[144,128]{1,0:T(1,128)}', space=vmem, size = 0x12000, scoped, tag = 'internal scratch']
  %s0 = inlined_call_operand.vmem [shape: bf16[2,8,32], index: 0, kind: input, shape index: {}]
  %s1 = inlined_call_operand.vmem [shape: bf16[32,256], index: 1, kind: input, shape index: {}]
  %s2 = inlined_call_operand.vmem [shape: f32[2,8,16], index: 2, kind: input, shape index: {}]
  %s3 = inlined_call_operand.vmem [shape: s32[2,16,1], index: 3, kind: input, shape index: {}]
  %s4 = inlined_call_operand.vmem [shape: f32[2,8,1], index: 4, kind: input, shape index: {}]
  %s5 = inlined_call_operand.vmem [shape: f32[2,8,1], index: 5, kind: input, shape index: {}]
  %s6 = inlined_call_operand.vmem [shape: f32[2,8,1], index: 6, kind: input, shape index: {}]
  %s7 = inlined_call_operand.vmem [shape: f32[2,8,256], index: 7, kind: output, shape index: {}]
  %s8 = sld [smem:[#allocation0]]
  $region102: #{_lambda_.3} parent=0
    _
  %s10 = ssub.s32 1, %s8
  %s11 = scalar_select 0, %s10, %s8
  $region1: #{_lambda_.3} parent=0
    #allocation2 [shape = 'u8[16384]{0}', space=vmem, size = 0x4000, scoped, tag = 'input window, operand 1']
    loop: start=0, step=1, limit=6
    $region2: #{_lambda_.3} parent=1 // loop_pre_header
      _
    $region3: #{_lambda_.3} parent=1 // loop_header
      %s13 = sphi 0, %s17
      %p14 = scmp.ge.s32.totalorder %s13, 6
      %s20 = sphi 0, %s39
      %s21 = sphi 0, %s35
      %s22 = sphi 0, %s31
      %s23 = sphi 0, %s20
      %s24 = sphi 0, %s21
      %s25 = sphi 0, %s22
      %s26 = sphi 0, %s23
      %s27 = sphi 0, %s24
      %s28 = sphi 0, %s25
      %s44 = sphi 0, %s46
      %s47 = sphi 0, %s44
      %s48 = sphi 0, %s47
      %s64 = sphi 0, %s48
      %s70 = sphi 0, %s72
      %s73 = sphi 0, %s70
      %s74 = sphi 0, %s73
      %s90 = sphi 0, %s74
      %s98 = sphi 0, %s100
      %s101 = sphi 0, %s98
      %s102 = sphi 0, %s101
      %s118 = sphi 0, %s102
      %s124 = sphi 0, %s126
      %s127 = sphi 0, %s124
      %s128 = sphi 0, %s127
      %s144 = sphi 0, %s128
      %s152 = sphi 0, %s154
      %s155 = sphi 0, %s152
      %s156 = sphi 0, %s155
      %s172 = sphi 0, %s156
      %s180 = sphi 0, %s182
      %s183 = sphi 0, %s180
      %s184 = sphi 0, %s183
      %s200 = sphi 0, %s184
      %s208 = sphi 0, %s210
      %s211 = sphi 0, %s208
      %s212 = sphi 0, %s211
      %s228 = sphi 0, %s212
      %s238 = sphi 0, %s240
      %s241 = sphi 0, %s238
      %s242 = sphi 0, %s241
      %s258 = sphi 0, %s242
    $region4: #{_lambda_.3} parent=1 // loop_header_branch
      %16 = sbr.rel (%p14) target = $region8
    $region5: #{_lambda_.3} parent=1 // loop_body
      %s18 = ssub.s32 %s13, 1
      %s19 = ssub.s32 %s13, 2
      %s29 = sadd.s32 1, %s22
      %p30 = scmp.ge.s32.totalorder %s29, 1
      %s31 = scalar_select %p30, 0, %s29
      %s32 = sadd.s32 1, %s21
      %s33 = scalar_select %p30, %s32, %s21
      %p34 = scmp.ge.s32.totalorder %s33, 2
      %s35 = scalar_select %p34, 0, %s33
      %s36 = sadd.s32 1, %s20
      %s37 = scalar_select %p34, %s36, %s20
      %p38 = scmp.ge.s32.totalorder %s37, 2
      %s39 = scalar_select %p38, 0, %s37
      %s40 = ssub.s32 %s21, %s35
      %s41 = ssub.s32 %s22, %s31
      %s42 = sor.u32 %s40, %s41
      %p43 = scmp.eq.s32.totalorder %s42, 0
      %s45 = sadd.s32 %s44, 1
      %s46 = scalar_select %p43, %s44, %s45
      %p49 = pneg %p43
      %p50 = scmp.eq.s32.totalorder %s13, 3
      %p51 = por %p49, %p50
      %p52 = scmp.ne.s32.totalorder %s44, %s47
      %p53 = scmp.eq.s32.totalorder %s13, 0
      %p54 = por %p52, %p53
      %p55 = scmp.ne.s32.totalorder %s44, %s47
      %p56 = scmp.eq.s32.totalorder %s18, 3
      %p57 = por %p55, %p56
      %p58 = scmp.ne.s32.totalorder %s47, %s48
      %p59 = scmp.eq.s32.totalorder %s18, 0
      %p60 = por %p58, %p59
      %p61 = scmp.ne.s32.totalorder %s47, %s48
      %p62 = scmp.eq.s32.totalorder %s19, 3
      %p63 = por %p61, %p62
      %p65 = scmp.ne.s32.totalorder %s48, %s64
      %p66 = scmp.eq.s32.totalorder %s19, 0
      %p67 = por %p65, %p66
      %s68 = ssub.s32 %s20, %s39
      %p69 = scmp.eq.s32.totalorder %s68, 0
      %s71 = sadd.s32 %s70, 1
      %s72 = scalar_select %p69, %s70, %s71
      %p75 = pneg %p69
      %p76 = scmp.eq.s32.totalorder %s13, 3
      %p77 = por %p75, %p76
      %p78 = scmp.ne.s32.totalorder %s70, %s73
      %p79 = scmp.eq.s32.totalorder %s13, 0
      %p80 = por %p78, %p79
      %p81 = scmp.ne.s32.totalorder %s70, %s73
      %p82 = scmp.eq.s32.totalorder %s18, 3
      %p83 = por %p81, %p82
      %p84 = scmp.ne.s32.totalorder %s73, %s74
      %p85 = scmp.eq.s32.totalorder %s18, 0
      %p86 = por %p84, %p85
      %p87 = scmp.ne.s32.totalorder %s73, %s74
      %p88 = scmp.eq.s32.totalorder %s19, 3
      %p89 = por %p87, %p88
      %p91 = scmp.ne.s32.totalorder %s74, %s90
      %p92 = scmp.eq.s32.totalorder %s19, 0
      %p93 = por %p91, %p92
      %s94 = ssub.s32 %s21, %s35
      %s95 = ssub.s32 %s22, %s31
      %s96 = sor.u32 %s94, %s95
      %p97 = scmp.eq.s32.totalorder %s96, 0
      %s99 = sadd.s32 %s98, 1
      %s100 = scalar_select %p97, %s98, %s99
      %p103 = pneg %p97
      %p104 = scmp.eq.s32.totalorder %s13, 3
      %p105 = por %p103, %p104
      %p106 = scmp.ne.s32.totalorder %s98, %s101
      %p107 = scmp.eq.s32.totalorder %s13, 0
      %p108 = por %p106, %p107
      %p109 = scmp.ne.s32.totalorder %s98, %s101
      %p110 = scmp.eq.s32.totalorder %s18, 3
      %p111 = por %p109, %p110
      %p112 = scmp.ne.s32.totalorder %s101, %s102
      %p113 = scmp.eq.s32.totalorder %s18, 0
      %p114 = por %p112, %p113
      %p115 = scmp.ne.s32.totalorder %s101, %s102
      %p116 = scmp.eq.s32.totalorder %s19, 3
      %p117 = por %p115, %p116
      %p119 = scmp.ne.s32.totalorder %s102, %s118
      %p120 = scmp.eq.s32.totalorder %s19, 0
      %p121 = por %p119, %p120
      %s122 = ssub.s32 %s21, %s35
      %p123 = scmp.eq.s32.totalorder %s122, 0
      %s125 = sadd.s32 %s124, 1
      %s126 = scalar_select %p123, %s124, %s125
      %p129 = pneg %p123
      %p130 = scmp.eq.s32.totalorder %s13, 3
      %p131 = por %p129, %p130
      %p132 = scmp.ne.s32.totalorder %s124, %s127
      %p133 = scmp.eq.s32.totalorder %s13, 0
      %p134 = por %p132, %p133
      %p135 = scmp.ne.s32.totalorder %s124, %s127
      %p136 = scmp.eq.s32.totalorder %s18, 3
      %p137 = por %p135, %p136
      %p138 = scmp.ne.s32.totalorder %s127, %s128
      %p139 = scmp.eq.s32.totalorder %s18, 0
      %p140 = por %p138, %p139
      %p141 = scmp.ne.s32.totalorder %s127, %s128
      %p142 = scmp.eq.s32.totalorder %s19, 3
      %p143 = por %p141, %p142
      %p145 = scmp.ne.s32.totalorder %s128, %s144
      %p146 = scmp.eq.s32.totalorder %s19, 0
      %p147 = por %p145, %p146
      %s148 = ssub.s32 %s21, %s35
      %s149 = ssub.s32 %s22, %s31
      %s150 = sor.u32 %s148, %s149
      %p151 = scmp.eq.s32.totalorder %s150, 0
      %s153 = sadd.s32 %s152, 1
      %s154 = scalar_select %p151, %s152, %s153
      %p157 = pneg %p151
      %p158 = scmp.eq.s32.totalorder %s13, 3
      %p159 = por %p157, %p158
      %p160 = scmp.ne.s32.totalorder %s152, %s155
      %p161 = scmp.eq.s32.totalorder %s13, 0
      %p162 = por %p160, %p161
      %p163 = scmp.ne.s32.totalorder %s152, %s155
      %p164 = scmp.eq.s32.totalorder %s18, 3
      %p165 = por %p163, %p164
      %p166 = scmp.ne.s32.totalorder %s155, %s156
      %p167 = scmp.eq.s32.totalorder %s18, 0
      %p168 = por %p166, %p167
      %p169 = scmp.ne.s32.totalorder %s155, %s156
      %p170 = scmp.eq.s32.totalorder %s19, 3
      %p171 = por %p169, %p170
      %p173 = scmp.ne.s32.totalorder %s156, %s172
      %p174 = scmp.eq.s32.totalorder %s19, 0
      %p175 = por %p173, %p174
      %s176 = ssub.s32 %s21, %s35
      %s177 = ssub.s32 %s22, %s31
      %s178 = sor.u32 %s176, %s177
      %p179 = scmp.eq.s32.totalorder %s178, 0
      %s181 = sadd.s32 %s180, 1
      %s182 = scalar_select %p179, %s180, %s181
      %p185 = pneg %p179
      %p186 = scmp.eq.s32.totalorder %s13, 3
      %p187 = por %p185, %p186
      %p188 = scmp.ne.s32.totalorder %s180, %s183
      %p189 = scmp.eq.s32.totalorder %s13, 0
      %p190 = por %p188, %p189
      %p191 = scmp.ne.s32.totalorder %s180, %s183
      %p192 = scmp.eq.s32.totalorder %s18, 3
      %p193 = por %p191, %p192
      %p194 = scmp.ne.s32.totalorder %s183, %s184
      %p195 = scmp.eq.s32.totalorder %s18, 0
      %p196 = por %p194, %p195
      %p197 = scmp.ne.s32.totalorder %s183, %s184
      %p198 = scmp.eq.s32.totalorder %s19, 3
      %p199 = por %p197, %p198
      %p201 = scmp.ne.s32.totalorder %s184, %s200
      %p202 = scmp.eq.s32.totalorder %s19, 0
      %p203 = por %p201, %p202
      %s204 = ssub.s32 %s21, %s35
      %s205 = ssub.s32 %s22, %s31
      %s206 = sor.u32 %s204, %s205
      %p207 = scmp.eq.s32.totalorder %s206, 0
      %s209 = sadd.s32 %s208, 1
      %s210 = scalar_select %p207, %s208, %s209
      %p213 = pneg %p207
      %p214 = scmp.eq.s32.totalorder %s13, 3
      %p215 = por %p213, %p214
      %p216 = scmp.ne.s32.totalorder %s208, %s211
      %p217 = scmp.eq.s32.totalorder %s13, 0
      %p218 = por %p216, %p217
      %p219 = scmp.ne.s32.totalorder %s208, %s211
      %p220 = scmp.eq.s32.totalorder %s18, 3
      %p221 = por %p219, %p220
      %p222 = scmp.ne.s32.totalorder %s211, %s212
      %p223 = scmp.eq.s32.totalorder %s18, 0
      %p224 = por %p222, %p223
      %p225 = scmp.ne.s32.totalorder %s211, %s212
      %p226 = scmp.eq.s32.totalorder %s19, 3
      %p227 = por %p225, %p226
      %p229 = scmp.ne.s32.totalorder %s212, %s228
      %p230 = scmp.eq.s32.totalorder %s19, 0
      %p231 = por %p229, %p230
      %s232 = ssub.s32 %s21, %s35
      %s233 = ssub.s32 %s22, %s31
      %s234 = sor.u32 %s232, %s233
      %s235 = ssub.s32 %s20, %s39
      %s236 = sor.u32 %s234, %s235
      %p237 = scmp.eq.s32.totalorder %s236, 0
      %s239 = sadd.s32 %s238, 1
      %s240 = scalar_select %p237, %s238, %s239
      %p243 = pneg %p237
      %p244 = scmp.eq.s32.totalorder %s13, 3
      %p245 = por %p243, %p244
      %p246 = scmp.ne.s32.totalorder %s238, %s241
      %p247 = scmp.eq.s32.totalorder %s13, 0
      %p248 = por %p246, %p247
      %p249 = scmp.ne.s32.totalorder %s238, %s241
      %p250 = scmp.eq.s32.totalorder %s18, 3
      %p251 = por %p249, %p250
      %p252 = scmp.ne.s32.totalorder %s241, %s242
      %p253 = scmp.eq.s32.totalorder %s18, 0
      %p254 = por %p252, %p253
      %p255 = scmp.ne.s32.totalorder %s241, %s242
      %p256 = scmp.eq.s32.totalorder %s19, 3
      %p257 = por %p255, %p256
      %p259 = scmp.ne.s32.totalorder %s242, %s258
      %p260 = scmp.eq.s32.totalorder %s19, 0
      %p261 = por %p259, %p260
      %p262 = scmp.le.s32.totalorder 1, %s13
      %p263 = scmp.lt.s32.totalorder %s13, 5
      %p264 = pnand %p262, %p263
      %p265 = pneg %p264
      // Predicated region
      $region9: #{_lambda_.3} parent=5 // pred_check
        _
      $region10: #{_lambda_.3} parent=5 // pred_check_branch
        %267 = sbr.rel (%p264) target = $region12
      $region11: #{_lambda_.3} parent=5 // pred_region
        %s268 = ssub.s32 %s13, 1
      $region12: #{_lambda_.3} parent=5 // pred_fallthru
        _
      %p269 = scmp.lt.s32.totalorder %s13, 4
      // Predicated region
      $region13: #{_lambda_.3} parent=5 // pred_check
        %p270 = pneg %p269
      $region14: #{_lambda_.3} parent=5 // pred_check_branch
        %272 = sbr.rel (%p270) target = $region16
      $region15: #{_lambda_.3} parent=5 // pred_region
        // Predicated region
        $region17: #{_lambda_.3} parent=15 // pred_check
          %p273 = pneg %p54
        $region18: #{_lambda_.3} parent=15 // pred_check_branch
          %275 = sbr.rel (%p273) target = $region20
        $region19: #{_lambda_.3} parent=15 // pred_region
          %p276 = scmp.lt.s32.totalorder %s21, 1
          %s277 = scalar_select %p276, %s21, 1
          %p278 = scmp.lt.s32.totalorder %s22, 0
          %s279 = scalar_select %p278, %s22, 0
          %s280 = sadd.s32 %s279, %s277
          %s281 = smul.addr %s280, 4
          %s282 = scalar_lea.vmem %s0, %s281
        $region20: #{_lambda_.3} parent=15 // pred_fallthru
          _
        // Predicated region
        $region21: #{_lambda_.3} parent=15 // pred_check
          %p283 = pneg %p80
        $region22: #{_lambda_.3} parent=15 // pred_check_branch
          %285 = sbr.rel (%p283) target = $region24
        $region23: #{_lambda_.3} parent=15 // pred_region
          %s286 = sand.u32 %s70, 1
          %s287 = sand.u32 %s70, 1
          %s288 = smul.addr %s287, 16
          %s289 = scalar_lea.vmem [#allocation2], %s288
          %s290 = smul.addr %s20, 4
          %s291 = scalar_lea.vmem %s1, %s290
          // Predicated region
          $region25: #{_lambda_.3} parent=23 // pred_check
            _
          $region26: #{_lambda_.3} parent=23 // pred_check_branch
            %293 = sbr.rel (0) target = $region28
          $region27: #{_lambda_.3} parent=23 // pred_region
            // Predicated region
            $region29: #{_lambda_.3} parent=27 // pred_check
              _
            $region30: #{_lambda_.3} parent=27 // pred_check_branch
              %295 = sbr.rel target = $region32
            $region31: #{_lambda_.3} parent=27 // pred_region
              // Predicated region
              $region44: #{_lambda_.3} parent=31 // pred_check
                _
              $region45: #{_lambda_.3} parent=31 // pred_check_branch
                %316 = sbr.rel (0) target = $region47
              $region46: #{_lambda_.3} parent=31 // pred_region
                loop: start=0, step=1, limit=1
                $region48: #{_lambda_.3} parent=46 // loop_pre_header
                  _
                $region49: #{_lambda_.3} parent=46 // loop_header
                  %s318 = sphi 0, %s322
                  %p319 = scmp.ge.s32.totalorder %s318, 1
                  %s323 = sphi %s291, %s291
                  %s324 = sphi %s289, %s289
                $region50: #{_lambda_.3} parent=46 // loop_header_branch
                  %321 = sbr.rel (%p319) target = $region54
                $region51: #{_lambda_.3} parent=46 // loop_body
                  _
                $region52: #{_lambda_.3} parent=46 // loop_footer
                  %s322 = sadd.s32 1, %s318
                $region53: #{_lambda_.3} parent=46 // loop_footer_branch
                  %317 = sbr.rel target = $region49
                $region54: #{_lambda_.3} parent=46 // loop_exit
                  _
                loop: start=0, step=1, limit=1
                $region55: #{_lambda_.3} parent=46 // loop_pre_header
                  _
                $region56: #{_lambda_.3} parent=46 // loop_header
                  %s327 = sphi 0, %s331
                  %p328 = scmp.ge.s32.totalorder %s327, 1
                  %s332 = sphi %s291, %s291
                  %s333 = sphi %s289, %s289
                $region57: #{_lambda_.3} parent=46 // loop_header_branch
                  %330 = sbr.rel (%p328) target = $region61
                $region58: #{_lambda_.3} parent=46 // loop_body
                  %v334 = vld [vmem:[%s332] sm:$0xf]
                  %335 = vst [vmem:[%s333] sm:$0xf] %v334
                  %v336 = vld [vmem:[%s332 + $0x8] sm:$0xf]
                  %337 = vst [vmem:[%s333 + $0x4] sm:$0xf] %v336
                  %v338 = vld [vmem:[%s332 + $0x10] sm:$0xf]
                  %339 = vst [vmem:[%s333 + $0x8] sm:$0xf] %v338
                  %v340 = vld [vmem:[%s332 + $0x18] sm:$0xf]
                  %341 = vst [vmem:[%s333 + $0xc] sm:$0xf] %v340
                $region59: #{_lambda_.3} parent=46 // loop_footer
                  %s331 = sadd.s32 1, %s327
                $region60: #{_lambda_.3} parent=46 // loop_footer_branch
                  %326 = sbr.rel target = $region56
                $region61: #{_lambda_.3} parent=46 // loop_exit
                  _
              $region47: #{_lambda_.3} parent=31 // pred_fallthru
                _
            $region32: #{_lambda_.3} parent=27 // pred_fallthru
              _
            // Predicated region
            $region33: #{_lambda_.3} parent=27 // pred_check
              _
            $region34: #{_lambda_.3} parent=27 // pred_check_branch
              %297 = sbr.rel (0) target = $region36
            $region35: #{_lambda_.3} parent=27 // pred_region
              loop: start=0, step=1, limit=1
              $region37: #{_lambda_.3} parent=35 // loop_pre_header
                _
              $region38: #{_lambda_.3} parent=35 // loop_header
                %s300 = sphi 0, %s304
                %p301 = scmp.ge.s32.totalorder %s300, 1
                %s305 = sphi %s291, %s291
                %s306 = sphi %s289, %s289
              $region39: #{_lambda_.3} parent=35 // loop_header_branch
                %303 = sbr.rel (%p301) target = $region43
              $region40: #{_lambda_.3} parent=35 // loop_body
                %v307 = vld [vmem:[%s305] sm:$0xf]
                %308 = vst [vmem:[%s306] sm:$0xf] %v307
                %v309 = vld [vmem:[%s305 + $0x8] sm:$0xf]
                %310 = vst [vmem:[%s306 + $0x4] sm:$0xf] %v309
                %v311 = vld [vmem:[%s305 + $0x10] sm:$0xf]
                %312 = vst [vmem:[%s306 + $0x8] sm:$0xf] %v311
                %v313 = vld [vmem:[%s305 + $0x18] sm:$0xf]
                %314 = vst [vmem:[%s306 + $0xc] sm:$0xf] %v313
              $region41: #{_lambda_.3} parent=35 // loop_footer
                %s304 = sadd.s32 1, %s300
              $region42: #{_lambda_.3} parent=35 // loop_footer_branch
                %299 = sbr.rel target = $region38
              $region43: #{_lambda_.3} parent=35 // loop_exit
                _
            $region36: #{_lambda_.3} parent=27 // pred_fallthru
              _
          $region28: #{_lambda_.3} parent=23 // pred_fallthru
            _
          %342 = vnop
        $region24: #{_lambda_.3} parent=15 // pred_fallthru
          _
        // Predicated region
        $region62: #{_lambda_.3} parent=15 // pred_check
          %p343 = pneg %p108
        $region63: #{_lambda_.3} parent=15 // pred_check_branch
          %345 = sbr.rel (%p343) target = $region65
        $region64: #{_lambda_.3} parent=15 // pred_region
          %p346 = scmp.lt.s32.totalorder %s21, 1
          %s347 = scalar_select %p346, %s21, 1
          %p348 = scmp.lt.s32.totalorder %s22, 0
          %s349 = scalar_select %p348, %s22, 0
          %s350 = sadd.s32 %s349, %s347
          %s351 = smul.addr %s350, 8
          %s352 = scalar_lea.vmem %s2, %s351
        $region65: #{_lambda_.3} parent=15 // pred_fallthru
          _
        // Predicated region
        $region66: #{_lambda_.3} parent=15 // pred_check
          %p353 = pneg %p134
        $region67: #{_lambda_.3} parent=15 // pred_check_branch
          %355 = sbr.rel (%p353) target = $region69
        $region68: #{_lambda_.3} parent=15 // pred_region
          %p356 = scmp.lt.s32.totalorder %s21, 1
          %s357 = scalar_select %p356, %s21, 1
          %s358 = smul.addr %s357, 2
          %s359 = smul.addr %s358, 8
          %s360 = scalar_lea.vmem %s3, %s359
        $region69: #{_lambda_.3} parent=15 // pred_fallthru
          _
        // Predicated region
        $region70: #{_lambda_.3} parent=15 // pred_check
          %p361 = pneg %p162
        $region71: #{_lambda_.3} parent=15 // pred_check_branch
          %363 = sbr.rel (%p361) target = $region73
        $region72: #{_lambda_.3} parent=15 // pred_region
          %p364 = scmp.lt.s32.totalorder %s21, 1
          %s365 = scalar_select %p364, %s21, 1
          %p366 = scmp.lt.s32.totalorder %s22, 0
          %s367 = scalar_select %p366, %s22, 0
          %s368 = sadd.s32 %s367, %s365
          %s369 = smul.addr %s368, 8
          %s370 = scalar_lea.vmem %s4, %s369
        $region73: #{_lambda_.3} parent=15 // pred_fallthru
          _
        // Predicated region
        $region74: #{_lambda_.3} parent=15 // pred_check
          %p371 = pneg %p190
        $region75: #{_lambda_.3} parent=15 // pred_check_branch
          %373 = sbr.rel (%p371) target = $region77
        $region76: #{_lambda_.3} parent=15 // pred_region
          %p374 = scmp.lt.s32.totalorder %s21, 1
          %s375 = scalar_select %p374, %s21, 1
          %p376 = scmp.lt.s32.totalorder %s22, 0
          %s377 = scalar_select %p376, %s22, 0
          %s378 = sadd.s32 %s377, %s375
          %s379 = smul.addr %s378, 8
          %s380 = scalar_lea.vmem %s5, %s379
        $region77: #{_lambda_.3} parent=15 // pred_fallthru
          _
        // Predicated region
        $region78: #{_lambda_.3} parent=15 // pred_check
          %p381 = pneg %p218
        $region79: #{_lambda_.3} parent=15 // pred_check_branch
          %383 = sbr.rel (%p381) target = $region81
        $region80: #{_lambda_.3} parent=15 // pred_region
          %p384 = scmp.lt.s32.totalorder %s21, 1
          %s385 = scalar_select %p384, %s21, 1
          %p386 = scmp.lt.s32.totalorder %s22, 0
          %s387 = scalar_select %p386, %s22, 0
          %s388 = sadd.s32 %s387, %s385
          %s389 = smul.addr %s388, 8
          %s390 = scalar_lea.vmem %s6, %s389
        $region81: #{_lambda_.3} parent=15 // pred_fallthru
          _
      $region16: #{_lambda_.3} parent=5 // pred_fallthru
        _
      %p391 = scmp.le.s32.totalorder 1, %s13
      %p392 = scmp.lt.s32.totalorder %s13, 5
      %p393 = pnand %p391, %p392
      %p394 = pneg %p393
      // Predicated region
      $region82: #{_lambda_.3} parent=5 // pred_check
        _
      $region83: #{_lambda_.3} parent=5 // pred_check_branch
        %396 = sbr.rel (%p393) target = $region85
      $region84: #{_lambda_.3} parent=5 // pred_region
        %s397 = ssub.s32 %s13, 1
        %s398 = sand.u32 %s73, 1
        %s399 = sand.u32 %s73, 1
        %s400 = smul.addr %s399, 16
        %s401 = scalar_lea.vmem [#allocation2], %s400
        // Predicated region
        $region86: #{_lambda_.3} parent=84 // pred_check
          %p402 = pneg %p86
        $region87: #{_lambda_.3} parent=84 // pred_check_branch
          %404 = sbr.rel (%p402) target = $region89
        $region88: #{_lambda_.3} parent=84 // pred_region
          _
        $region89: #{_lambda_.3} parent=84 // pred_fallthru
          _
        %p405 = scmp.lt.s32.totalorder %s24, 1
        %s406 = scalar_select %p405, %s24, 1
        %p407 = scmp.lt.s32.totalorder %s25, 0
        %s408 = scalar_select %p407, %s25, 0
        %s409 = sadd.s32 %s408, %s406
        %s410 = smul.addr %s409, 4
        %s411 = scalar_lea.vmem %s0, %s410
        %p412 = pneg %p60
        %p413 = pneg %p57
        %s414 = sand.u32 %s73, 1
        %s415 = sand.u32 %s73, 1
        %s416 = smul.addr %s415, 16
        %s417 = scalar_lea.vmem [#allocation2], %s416
        %p418 = pneg %p86
        %p419 = pneg %p83
        %p420 = scmp.lt.s32.totalorder %s24, 1
        %s421 = scalar_select %p420, %s24, 1
        %p422 = scmp.lt.s32.totalorder %s25, 0
        %s423 = scalar_select %p422, %s25, 0
        %s424 = sadd.s32 %s423, %s421
        %s425 = smul.addr %s424, 8
        %s426 = scalar_lea.vmem %s2, %s425
        %p427 = pneg %p114
        %p428 = pneg %p111
        %p429 = scmp.lt.s32.totalorder %s24, 1
        %s430 = scalar_select %p429, %s24, 1
        %s431 = smul.addr %s430, 2
        %s432 = smul.addr %s431, 8
        %s433 = scalar_lea.vmem %s3, %s432
        %p434 = pneg %p140
        %p435 = pneg %p137
        %p436 = scmp.lt.s32.totalorder %s24, 1
        %s437 = scalar_select %p436, %s24, 1
        %p438 = scmp.lt.s32.totalorder %s25, 0
        %s439 = scalar_select %p438, %s25, 0
        %s440 = sadd.s32 %s439, %s437
        %s441 = smul.addr %s440, 8
        %s442 = scalar_lea.vmem %s4, %s441
        %p443 = pneg %p168
        %p444 = pneg %p165
        %p445 = scmp.lt.s32.totalorder %s24, 1
        %s446 = scalar_select %p445, %s24, 1
        %p447 = scmp.lt.s32.totalorder %s25, 0
        %s448 = scalar_select %p447, %s25, 0
        %s449 = sadd.s32 %s448, %s446
        %s450 = smul.addr %s449, 8
        %s451 = scalar_lea.vmem %s5, %s450
        %p452 = pneg %p196
        %p453 = pneg %p193
        %p454 = scmp.lt.s32.totalorder %s24, 1
        %s455 = scalar_select %p454, %s24, 1
        %p456 = scmp.lt.s32.totalorder %s25, 0
        %s457 = scalar_select %p456, %s25, 0
        %s458 = sadd.s32 %s457, %s455
        %s459 = smul.addr %s458, 8
        %s460 = scalar_lea.vmem %s6, %s459
        %p461 = pneg %p224
        %p462 = pneg %p221
        %p463 = pneg %p254
        %p464 = pneg %p251
        %p465 = scmp.lt.s32.totalorder %s24, 1
        %s466 = scalar_select %p465, %s24, 1
        %p467 = scmp.lt.s32.totalorder %s25, 0
        %s468 = scalar_select %p467, %s25, 0
        %p469 = scmp.lt.s32.totalorder %s23, 1
        %s470 = scalar_select %p469, %s23, 1
        %s471 = smul.addr %s468, 2
        %s472 = sadd.s32 %s470, %s471
        %s473 = smul.addr %s466, 2
        %s474 = sadd.s32 %s472, %s473
        %s475 = smul.addr %s474, 8
        %s476 = scalar_lea.vmem %s7, %s475
        %p477 = scmp.lt.s32.totalorder %s24, 1
        %s478 = scalar_select %p477, %s24, 1
        %p479 = scmp.lt.s32.totalorder %s25, 0
        %s480 = scalar_select %p479, %s25, 0
        %s481 = sadd.s32 %s480, %s478
        %s482 = smul.addr %s481, 4
        %s483 = scalar_lea.vmem %s0, %s482
        %p484 = scmp.lt.s32.totalorder %s24, 1
        %s485 = scalar_select %p484, %s24, 1
        %p486 = scmp.lt.s32.totalorder %s25, 0
        %s487 = scalar_select %p486, %s25, 0
        %s488 = sadd.s32 %s487, %s485
        %s489 = smul.addr %s488, 8
        %s490 = scalar_lea.vmem %s2, %s489
        %p491 = scmp.lt.s32.totalorder %s24, 1
        %s492 = scalar_select %p491, %s24, 1
        %s493 = smul.addr %s492, 2
        %s494 = smul.addr %s493, 8
        %s495 = scalar_lea.vmem %s3, %s494
        %p496 = scmp.lt.s32.totalorder %s24, 1
        %s497 = scalar_select %p496, %s24, 1
        %p498 = scmp.lt.s32.totalorder %s25, 0
        %s499 = scalar_select %p498, %s25, 0
        %s500 = sadd.s32 %s499, %s497
        %s501 = smul.addr %s500, 8
        %s502 = scalar_lea.vmem %s4, %s501
        %p503 = scmp.lt.s32.totalorder %s24, 1
        %s504 = scalar_select %p503, %s24, 1
        %p505 = scmp.lt.s32.totalorder %s25, 0
        %s506 = scalar_select %p505, %s25, 0
        %s507 = sadd.s32 %s506, %s504
        %s508 = smul.addr %s507, 8
        %s509 = scalar_lea.vmem %s5, %s508
        %p510 = scmp.lt.s32.totalorder %s24, 1
        %s511 = scalar_select %p510, %s24, 1
        %p512 = scmp.lt.s32.totalorder %s25, 0
        %s513 = scalar_select %p512, %s25, 0
        %s514 = sadd.s32 %s513, %s511
        %s515 = smul.addr %s514, 8
        %s516 = scalar_lea.vmem %s6, %s515
        %p517 = scmp.lt.s32.totalorder %s24, 1
        %s518 = scalar_select %p517, %s24, 1
        %p519 = scmp.lt.s32.totalorder %s25, 0
        %s520 = scalar_select %p519, %s25, 0
        %p521 = scmp.lt.s32.totalorder %s23, 1
        %s522 = scalar_select %p521, %s23, 1
        %s523 = smul.addr %s520, 2
        %s524 = sadd.s32 %s522, %s523
        %s525 = smul.addr %s518, 2
        %s526 = sadd.s32 %s524, %s525
        %s527 = smul.addr %s526, 8
        %s528 = scalar_lea.vmem %s7, %s527
        %s530 = smul.u32 %s23, 128
        %v531 = vld [vmem:[%s483] sm:$0xf]
        %v532 = vld [vmem:[%s401] sm:$0xf]
        %v533 = vld [vmem:[%s401 + $0x4] sm:$0xf]
        %v534 = vld [vmem:[%s401 + $0x8] sm:$0xf]
        %v535 = vld [vmem:[%s401 + $0xc] sm:$0xf]
        %v540 = vunpack.c.l.b16 %v532
        %v541 = vunpack.c.l.b16 %v533
        %v542 = vunpack.c.l.b16 %v534
        %v543 = vunpack.c.l.b16 %v535
        %v544 = vpack.c.b16 %v541, %v540
        %v545 = vpack.c.b16 %v543, %v542
        %vm548 = vcmask 261120
        %v550 = vsel %vm548, %v531, 0
        %552 = vmatprep.subr.bf16.mxu0 0
        %553 = vmatpush1.bf16.msra.mxu0 %v544
        %554 = vmatprep.subr.bf16.mxu0 0
        %555 = vmatpush1.bf16.msra.mxu0 %v545
        %556 = vmatprep.subr.bf16.mxu0 0
        %557 = vmatpush1.bf16.msra.mxu0 0
        %558 = vmatprep.subr.bf16.mxu0 0
        %559 = vmatpush1.bf16.msra.mxu0 0
        %560 = vmatprep.subr.bf16.mxu0 0
        %561 = vmatpush1.bf16.msra.mxu0 0
        %562 = vmatprep.subr.bf16.mxu0 0
        %563 = vmatpush1.bf16.msra.mxu0 0
        %564 = vmatprep.subr.bf16.mxu0 0
        %565 = vmatpush1.bf16.msra.mxu0 0
        %566 = vmatprep.subr.bf16.mxu0 0
        %567 = vmatpush1.bf16.msra.mxu0 0
        %568 = vmatprep.subr.bf16.mxu0 0
        %569 = vmatpush1.bf16.msra.mxu0 0
        %570 = vmatprep.subr.bf16.mxu0 0
        %571 = vmatpush1.bf16.msra.mxu0 0
        %572 = vmatprep.subr.bf16.mxu0 0
        %573 = vmatpush1.bf16.msra.mxu0 0
        %574 = vmatprep.subr.bf16.mxu0 0
        %575 = vmatpush1.bf16.msra.mxu0 0
        %576 = vmatprep.subr.bf16.mxu0 0
        %577 = vmatpush1.bf16.msra.mxu0 0
        %578 = vmatprep.subr.bf16.mxu0 0
        %579 = vmatpush1.bf16.msra.mxu0 0
        %580 = vmatprep.subr.bf16.mxu0 0
        %581 = vmatpush1.bf16.msra.mxu0 0
        %582 = vmatprep.subr.bf16.mxu0 0
        %583 = vmatpush1.bf16.msra.mxu0 0
        %584 = vmatprep.mubr.bf16.mxu0 0
        %585 = vmatmul.mubr.bf16.gmra.mrb[0].mxu0 %v550
        %v586 = vpop.f32.mrb[0].mxu0
        %v587 = vadd.f32 0.0, %v586
        %v588 = vpop.f32.mrb[0].mxu0
        %v589 = vpop.f32.mrb[0].mxu0
        %v590 = vpop.f32.mrb[0].mxu0
        %591 = vdwg.mxu0
        %v592 = vld [vmem:[%s516] sm:$0xff]
        %v593 = vld [vmem:[%s509] sm:$0xff]
        %v594 = vrcp.pop %v593
        %v595 = vld [vmem:[%s502] sm:$0xff]
        %597 = vset.pattern.permute.xlu0 0
        %598 = vperm.xlu0 %597, %v595
        %v599 = vpop.permute.xlu0 %598
        %v601 = vsub.f32 %v587, %v599
        %v602 = vmul.f32 %v601, 1.442695
        %v603 = vpow.pop %v602
        %v604 = vsub.f32 1.0, %v592
        %v605 = vmul.f32 %v604, %v594
        %607 = vset.pattern.permute.xlu0 0
        %608 = vperm.xlu0 %607, %v605
        %v609 = vpop.permute.xlu0 %608
        %v611 = vmul.f32 %v603, %v609
        %v612 = vld [vmem:[%s495] sm:$0xff]
        %v613 = vld [vmem:[%s495 + $0x8] sm:$0xff]
        %v614 = vlaneseq
        %v615 = vand.u32 %v614, 127
        %v616 = vstv %s530
        %v617 = vadd.s32 %v615, %v616
        %618 = vset.pattern.permute.xlu0 0
        %619 = vperm.xlu0 %618, %v612
        %v620 = vpop.permute.xlu0 %619
        %621 = vset.pattern.permute.xlu0 0
        %622 = vperm.xlu0 %621, %v613
        %v623 = vpop.permute.xlu0 %622
        %vm624 = vcmp.eq.s32.totalorder %v620, %v617
        %vm625 = vcmp.eq.s32.totalorder %v623, %v617
        %v626 = vsel %vm624, 1, 0
        %v627 = vsel %vm625, 1, 0
        %v628 = vcvt.s32.f32 %v626
        %v629 = vcvt.s32.f32 %v627
        %v630 = vpack.c.bf16 %v629, %v628
        %v631 = vld [vmem:[%s490] sm:$0xff]
        %633 = vset.pattern.permute.xlu0 0
        %634 = vperm.xlu0 %633, %v592
        %v635 = vpop.permute.xlu0 %634
        %v637 = vmul.f32 %v631, %v635
        %v638 = vpack.c.bf16 %v637, %v637
        %vm639 = vcmask 130048
        %v641 = vsel %vm639, %v638, 0
        %643 = vmatprep.subr.bf16.mxu0 0
        %644 = vmatpush1.bf16.msra.mxu0 %v630
        %645 = vmatprep.subr.bf16.mxu0 0
        %646 = vmatpush1.bf16.msra.mxu0 0
        %647 = vmatprep.subr.bf16.mxu0 0
        %648 = vmatpush1.bf16.msra.mxu0 0
        %649 = vmatprep.subr.bf16.mxu0 0
        %650 = vmatpush1.bf16.msra.mxu0 0
        %651 = vmatprep.subr.bf16.mxu0 0
        %652 = vmatpush1.bf16.msra.mxu0 0
        %653 = vmatprep.subr.bf16.mxu0 0
        %654 = vmatpush1.bf16.msra.mxu0 0
        %655 = vmatprep.subr.bf16.mxu0 0
        %656 = vmatpush1.bf16.msra.mxu0 0
        %657 = vmatprep.subr.bf16.mxu0 0
        %658 = vmatpush1.bf16.msra.mxu0 0
        %659 = vmatprep.subr.bf16.mxu0 0
        %660 = vmatpush1.bf16.msra.mxu0 0
        %661 = vmatprep.subr.bf16.mxu0 0
        %662 = vmatpush1.bf16.msra.mxu0 0
        %663 = vmatprep.subr.bf16.mxu0 0
        %664 = vmatpush1.bf16.msra.mxu0 0
        %665 = vmatprep.subr.bf16.mxu0 0
        %666 = vmatpush1.bf16.msra.mxu0 0
        %667 = vmatprep.subr.bf16.mxu0 0
        %668 = vmatpush1.bf16.msra.mxu0 0
        %669 = vmatprep.subr.bf16.mxu0 0
        %670 = vmatpush1.bf16.msra.mxu0 0
        %671 = vmatprep.subr.bf16.mxu0 0
        %672 = vmatpush1.bf16.msra.mxu0 0
        %673 = vmatprep.subr.bf16.mxu0 0
        %674 = vmatpush1.bf16.msra.mxu0 0
        %675 = vmatprep.mubr.bf16.mxu0 0
        %676 = vmatmul.mubr.bf16.gmra.mrb[0].mxu0 %v641
        %v677 = vpop.f32.mrb[0].mxu0
        %v678 = vadd.f32 0.0, %v677
        %v679 = vpop.f32.mrb[0].mxu0
        %v680 = vpop.f32.mrb[0].mxu0
        %v681 = vpop.f32.mrb[0].mxu0
        %682 = vdwg.mxu0
        %v683 = vadd.f32 %v611, %v678
        %v684 = vadd.f32 %v683, 1e-07
        %v685 = vlog2.pop %v684
        %v686 = vmul.f32 %v685, 0.6931472
        %687 = vst [vmem:[%s528] sm:$0xff] %v686
        %p688 = scmp.lt.s32.totalorder %s24, 1
        %s689 = scalar_select %p688, %s24, 1
        %p690 = scmp.lt.s32.totalorder %s25, 0
        %s691 = scalar_select %p690, %s25, 0
        %p692 = scmp.lt.s32.totalorder %s23, 1
        %s693 = scalar_select %p692, %s23, 1
        %s694 = smul.addr %s691, 2
        %s695 = sadd.s32 %s693, %s694
        %s696 = smul.addr %s689, 2
        %s697 = sadd.s32 %s695, %s696
        %s698 = smul.addr %s697, 8
        %s699 = scalar_lea.vmem %s7, %s698
        // Predicated region
        $region90: #{_lambda_.3} parent=84 // pred_check
          %p700 = pneg %p251
        $region91: #{_lambda_.3} parent=84 // pred_check_branch
          %702 = sbr.rel (%p700) target = $region93
        $region92: #{_lambda_.3} parent=84 // pred_region
          _
        $region93: #{_lambda_.3} parent=84 // pred_fallthru
          _
      $region85: #{_lambda_.3} parent=5 // pred_fallthru
        _
      %p703 = scmp.le.s32.totalorder 2, %s13
      // Predicated region
      $region94: #{_lambda_.3} parent=5 // pred_check
        %p704 = pneg %p703
      $region95: #{_lambda_.3} parent=5 // pred_check_branch
        %706 = sbr.rel (%p704) target = $region97
      $region96: #{_lambda_.3} parent=5 // pred_region
        %s707 = ssub.s32 %s13, 2
        // Predicated region
        $region98: #{_lambda_.3} parent=96 // pred_check
          %p708 = pneg %p257
        $region99: #{_lambda_.3} parent=96 // pred_check_branch
          %710 = sbr.rel (%p708) target = $region101
        $region100: #{_lambda_.3} parent=96 // pred_region
          %p711 = scmp.lt.s32.totalorder %s27, 1
          %s712 = scalar_select %p711, %s27, 1
          %p713 = scmp.lt.s32.totalorder %s28, 0
          %s714 = scalar_select %p713, %s28, 0
          %p715 = scmp.lt.s32.totalorder %s26, 1
          %s716 = scalar_select %p715, %s26, 1
          %s717 = smul.addr %s714, 2
          %s718 = sadd.s32 %s716, %s717
          %s719 = smul.addr %s712, 2
          %s720 = sadd.s32 %s718, %s719
          %s721 = smul.addr %s720, 8
          %s722 = scalar_lea.vmem %s7, %s721
        $region101: #{_lambda_.3} parent=96 // pred_fallthru
          _
      $region97: #{_lambda_.3} parent=5 // pred_fallthru
        _
    $region6: #{_lambda_.3} parent=1 // loop_footer
      %s17 = sadd.s32 1, %s13
    $region7: #{_lambda_.3} parent=1 // loop_footer_branch
      %12 = sbr.rel target = $region3
    $region8: #{_lambda_.3} parent=1 // loop_exit
      _

</llo_original>
